<compile_context>
chip_gen: v7x
topology: tpu7x:2x2x1
jax: 0.10.0
libtpu: 0.0.40
codegen_flags: <defaults>
</compile_context>

<pallas_src>
import functools
import math
import numpy as np
import jax
import jax.numpy as jnp
from jax import lax
from jax.experimental import pallas as pl
from jax.experimental.pallas import tpu as pltpu


# ---------------------------------------------------------------------------
# Clebsch-Gordan setup (glue; mirrors torch_gauge without sympy/joblib/torch)
# ---------------------------------------------------------------------------
def get_clebsch_gordan_coefficient(j1, j2, j, m1, m2, m):
    """Condon-Shortley CG coefficient via Racah's formula (integer angular momenta)."""
    if m1 + m2 != m:
        return 0.0
    if j < abs(j1 - j2) or j > j1 + j2:
        return 0.0
    if abs(m1) > j1 or abs(m2) > j2 or abs(m) > j:
        return 0.0
    f = math.factorial
    pref = math.sqrt(
        (2 * j + 1) * f(j1 + j2 - j) * f(j1 - j2 + j) * f(-j1 + j2 + j) / f(j1 + j2 + j + 1)
    )
    pref *= math.sqrt(
        f(j1 + m1) * f(j1 - m1) * f(j2 + m2) * f(j2 - m2) * f(j + m) * f(j - m)
    )
    kmin = max(0, j2 - j - m1, j1 + m2 - j)
    kmax = min(j1 + j2 - j, j1 - m1, j2 + m2)
    s = 0.0
    for k in range(kmin, kmax + 1):
        s += (-1.0) ** k / (
            f(k) * f(j1 + j2 - j - k) * f(j1 - m1 - k) * f(j2 + m2 - k)
            * f(j - j2 + m1 + k) * f(j - j1 - m2 + k)
        )
    return pref * s


def csh_to_rsh(j):
    """Unitary transform from complex to real spherical harmonics (torch_gauge convention)."""
    mat = np.zeros((2 * j + 1, 2 * j + 1), dtype=np.complex128)
    for m in range(-j, j + 1):
        if m < 0:
            mat[j + m, j + m] = 1j / math.sqrt(2)
            mat[j - m, j + m] = -1j * (-1) ** m / math.sqrt(2)
        elif m == 0:
            mat[j, j] = 1.0
        else:
            mat[j - m, j + m] = 1.0 / math.sqrt(2)
            mat[j + m, j + m] = (-1) ** m / math.sqrt(2)
    return mat


def cg_compactify(coeffs, j1, j2, j):
    shape = coeffs.shape
    j1s = np.broadcast_to(np.arange(-j1, j1 + 1).reshape(2 * j1 + 1, 1, 1), shape)
    j2s = np.broadcast_to(np.arange(-j2, j2 + 1).reshape(1, 2 * j2 + 1, 1), shape)
    js = np.broadcast_to(np.arange(-j, j + 1).reshape(1, 1, 2 * j + 1), shape)
    mask = np.abs(coeffs) > 1e-12
    return np.stack(
        [j1s[mask].astype(np.float64), j2s[mask].astype(np.float64),
         js[mask].astype(np.float64), coeffs[mask]], axis=0)


def get_rsh_cg_coefficients(j1, j2, j):
    csh_cg = np.zeros((2 * j1 + 1, 2 * j2 + 1, 2 * j + 1), dtype=np.float64)
    for m1 in range(-j1, j1 + 1):
        for m2 in range(-j2, j2 + 1):
            if m1 + m2 < -j or m1 + m2 > j:
                continue
            csh_cg[j1 + m1, j2 + m2, j + m1 + m2] = get_clebsch_gordan_coefficient(
                j1, j2, j, m1, m2, m1 + m2)
    c2r_j1, c2r_j2, c2r_j = csh_to_rsh(j1), csh_to_rsh(j2), csh_to_rsh(j)
    rsh_cg = np.einsum("abc,ai,bj,ck->ijk", csh_cg.astype(np.complex128),
                       c2r_j1, c2r_j2, c2r_j.conj()) * (-1j) ** (j1 + j2 + j)
    assert np.allclose(rsh_cg.imag, 0.0, atol=1e-10)
    return cg_compactify(rsh_cg.real, j1, j2, j)


def mod_cgp_coupler_init(metadata_1, metadata_2, overlap_out=False, trunc_in=True):
    """Exact translation of ModCGPCoupler._init_params (numpy)."""
    metadata_1 = np.asarray(metadata_1, dtype=np.int64)
    metadata_2 = np.asarray(metadata_2, dtype=np.int64)
    assert metadata_1.ndim == 1 and metadata_2.ndim == 1
    assert metadata_1.shape[0] == metadata_2.shape[0]
    assert metadata_1.shape[0] % 2 == 0

    metadata_in = np.stack([metadata_1, metadata_2], axis=0)
    max_n_out = np.maximum(metadata_1, metadata_2)
    n_irreps_per_l = np.arange(metadata_in.shape[1] // 2) * 2 + 1
    n_irreps_per_lp = np.repeat(n_irreps_per_l, 2)
    repid_offsets_in = np.cumsum(metadata_in * n_irreps_per_lp[None, :], axis=1)
    repid_offsets_in = np.concatenate(
        [np.zeros((2, 1), dtype=np.int64), repid_offsets_in[:, :-1]], axis=1)

    cg_tilde, repids_in1, repids_in2, repids_out = [], [], [], []
    max_l = metadata_in.shape[1] // 2 - 1
    valid_coupling_ids = []
    metadata_out = np.zeros_like(max_n_out)
    for lout in range(max_l + 1):
        for pout in (1, -1):
            for lin1 in range(max_l + 1):
                for lin2 in range(max_l + 1):
                    for pin1 in (1, -1):
                        for pin2 in (1, -1):
                            coupling_parity = (-1) ** (lout + lin1 + lin2)
                            if pin1 * pin2 * coupling_parity != pout:
                                continue
                            if lin1 + lin2 < lout or abs(lin1 - lin2) > lout:
                                continue
                            lpin1 = 2 * lin1 + (1 - pin1) // 2
                            lpin2 = 2 * lin2 + (1 - pin2) // 2
                            lpout = 2 * lout + (1 - pout) // 2
                            if trunc_in:
                                if lin1 + lin2 > max_l:
                                    continue
                                degeneracy = int(min(
                                    metadata_in[0, lpin1], metadata_in[1, lpin2],
                                    max_n_out[2 * (lin1 + lin2) + (1 - pout) // 2]))
                            else:
                                if lout > max_l:
                                    continue
                                degeneracy = int(min(
                                    metadata_in[0, lpin1], metadata_in[1, lpin2],
                                    max_n_out[lpout]))
                            if not overlap_out:
                                metadata_out[lpout] += degeneracy
                            elif degeneracy > metadata_out[lout]:
                                metadata_out[lout] = degeneracy
                            if degeneracy > 0:
                                valid_coupling_ids.append((lpout, lpin1, lpin2, degeneracy))

    repid_offsets_out = np.cumsum(metadata_out * n_irreps_per_lp)
    repid_offsets_out = np.concatenate([[0], repid_offsets_out[:-1]]).astype(np.int64)

    out_ns_offset, lpout_last = 0, 0
    for lpout, lpin1, lpin2, degeneracy in valid_coupling_ids:
        if lpout > lpout_last:
            out_ns_offset = 0
        lin1, lin2, lout = lpin1 // 2, lpin2 // 2, lpout // 2
        cg_source = get_rsh_cg_coefficients(lin1, lin2, lout)
        cg_segment = np.repeat(cg_source, degeneracy, axis=1)
        ns_segment = np.tile(np.arange(degeneracy), cg_source.shape[1])
        repids_in1_3j = (repid_offsets_in[0, lpin1]
                         + (cg_segment[0] + lin1) * metadata_in[0, lpin1] + ns_segment)
        repids_in2_3j = (repid_offsets_in[1, lpin2]
                         + (cg_segment[1] + lin2) * metadata_in[1, lpin2] + ns_segment)
        repids_out_3j = (repid_offsets_out[lpout]
                         + (cg_segment[2] + lout) * metadata_out[lpout]
                         + out_ns_offset + ns_segment)
        cg_tilde.append(cg_segment[3])
        repids_in1.append(repids_in1_3j)
        repids_in2.append(repids_in2_3j)
        repids_out.append(repids_out_3j)
        if not overlap_out:
            out_ns_offset += degeneracy
        lpout_last = lpout

    cg_tilde = np.concatenate(cg_tilde).astype(np.float64)
    repids_in1 = np.rint(np.concatenate(repids_in1)).astype(np.int64)
    repids_in2 = np.rint(np.concatenate(repids_in2)).astype(np.int64)
    repids_out = np.rint(np.concatenate(repids_out)).astype(np.int64)
    dim_in1 = int(np.sum(metadata_1 * n_irreps_per_lp))
    dim_in2 = int(np.sum(metadata_2 * n_irreps_per_lp))
    dim_out = int(np.sum(metadata_out * n_irreps_per_lp))   # == out_layout.shape[1]
    assert dim_out == 0 or repids_out.max() < dim_out
    return dict(cg_tilde=cg_tilde, repids_in1=repids_in1, repids_in2=repids_in2,
                repids_out=repids_out, metadata_out=metadata_out,
                dim_in1=dim_in1, dim_in2=dim_in2, dim_out=dim_out)


# ---------------------------------------------------------------------------
# Hardware introspection (generation-aware tuning, with conservative fallbacks)
# ---------------------------------------------------------------------------
def _round_up(x, m):
    return (x + m - 1) // m * m


@functools.lru_cache(maxsize=None)
def _tpu_generation_info():
    """Return (vmem_capacity_bytes, is_v5, is_v7x) with conservative fallbacks."""
    kind = ""
    try:
        kind = jax.devices()[0].device_kind.lower()
    except Exception:
        kind = ""
    is_v5 = "v5" in kind
    is_v7 = "7" in kind
    vmem = None
    try:
        vmem = int(pltpu.get_tpu_info().vmem_capacity_bytes)
    except Exception:
        vmem = None
    if vmem is None:
        vmem = 64 * 1024 * 1024 if is_v7 else 128 * 1024 * 1024
    return vmem, is_v5, is_v7


@functools.lru_cache(maxsize=None)
def _resolve_dot_precision():
    """Resolve the fastest f32 dot precision the Pallas/Mosaic stack lowers.

    AOT-compiles a tiny standalone kernel with HIGH (3-pass bf16, ~2x the MXU
    throughput of HIGHEST); if that compile is rejected, falls back to HIGHEST.
    The probe never executes and is isolated from the real kernel, so genuine
    failures of the real kernel (shape/VMEM issues) are never masked.
    """
    def _probe_kernel(a_ref, b_ref, o_ref):
        o_ref[...] = jnp.dot(a_ref[...], b_ref[...],
                             preferred_element_type=jnp.float32,
                             precision=lax.Precision.HIGH)

    pc = pl.pallas_call(
        _probe_kernel, out_shape=jax.ShapeDtypeStruct((8, 128), jnp.float32))
    a = jax.ShapeDtypeStruct((8, 128), jnp.float32)
    b = jax.ShapeDtypeStruct((128, 128), jnp.float32)
    try:
        jax.jit(pc).lower(a, b).compile()
        return lax.Precision.HIGH
    except Exception:
        return lax.Precision.HIGHEST


# ---------------------------------------------------------------------------
# Pallas kernel:  out = ((x1 @ G1) * (x2 @ G2)) @ S     (S carries cg_tilde)
#
# grid = (batch_tiles, k_tiles); the K axis is a reduction accumulated directly
# into the VMEM-resident f32 output block (index map constant across k).
# ---------------------------------------------------------------------------
def _cgp_kernel(x1_ref, x2_ref, g1_ref, g2_ref, s_ref, o_ref, *, precision):
    @pl.when(pl.program_id(1) == 0)
    def _():
        o_ref[...] = jnp.zeros_like(o_ref)

    # G1/G2 are one-hot -> exact in bf16; upcast on the VPU (free when MXU-bound).
    g1 = g1_ref[...].astype(jnp.float32)
    g2 = g2_ref[...].astype(jnp.float32)
    x1_tilde = jnp.dot(x1_ref[...], g1,
                       preferred_element_type=jnp.float32, precision=precision)
    x2_tilde = jnp.dot(x2_ref[...], g2,
                       preferred_element_type=jnp.float32, precision=precision)
    o_ref[...] += jnp.dot(x1_tilde * x2_tilde, s_ref[...],
                          preferred_element_type=jnp.float32, precision=precision)


class ModCGPCouplerPallas:
    def __init__(self, metadata_1, metadata_2, overlap_out=False, trunc_in=True):
        p = mod_cgp_coupler_init(metadata_1, metadata_2, overlap_out, trunc_in)
        self.params = p
        K = int(p["cg_tilde"].shape[0])
        self.R1, self.R2, self.Rout = p["dim_in1"], p["dim_in2"], p["dim_out"]

        # ---- generation-aware tuning --------------------------------------
        vmem_cap, is_v5, is_v7 = _tpu_generation_info()
        self.K_ALIGN = 128 if is_v5 else 256          # v5e MXU is 128-wide
        if vmem_cap <= 64 * 1024 * 1024:              # v7x: 64 MiB VMEM / TC
            self.VMEM_BUDGET = 40 * 1024 * 1024
            self.VMEM_LIMIT = 48 * 1024 * 1024
            self.TB_MAX = 256
        else:                                         # v5e / v6e: 128 MiB VMEM
            self.VMEM_BUDGET = 96 * 1024 * 1024
            self.VMEM_LIMIT = 110 * 1024 * 1024
            self.TB_MAX = 512
        self._split_batch_for_cores = is_v7           # 2 TensorCores / chip

        # lane-padded accounting dims (kernel blocks use exact R1/R2; padding here
        # is only for the VMEM-footprint estimate and the padded output width)
        R1p = _round_up(max(self.R1, 1), 128)
        R2p = _round_up(max(self.R2, 1), 128)
        self.Routp = _round_up(max(self.Rout, 1), self.K_ALIGN)

        # ---- choose the K tile so the VMEM working set stays within budget ----
        Kp0 = _round_up(max(K, 1), self.K_ALIGN)
        tb = self.TB_MAX
        # residents independent of TK: double-buffered x1/x2 input and out blocks
        fixed = 4 * tb * 2 * (R1p + R2p + self.Routp)
        # bytes per K column: bf16 double-buffered G1/G2 + their f32 casts,
        # f32 double-buffered S slab, and 3 f32 (tb, TK) intermediates.
        per_k = (8 * (R1p + R2p) + 8 * self.Routp + 12 * tb)
        avail = max(self.VMEM_BUDGET - fixed, per_k * self.K_ALIGN)
        tk_cap = max(self.K_ALIGN, (avail // per_k) // self.K_ALIGN * self.K_ALIGN)
        n_k = -(-Kp0 // tk_cap)                        # number of K grid steps
        self.TK = _round_up(-(-Kp0 // n_k), self.K_ALIGN)
        self.Kp = self.TK * n_k                        # exact multiple of TK

        # one-hot gather matrices (bf16, exact) with EXACTLY R1/R2 rows so the
        # wrapper never feature-pads x1/x2, and CG-weighted scatter matrix (f32).
        g1 = np.zeros((self.R1, self.Kp), np.float32)
        g1[p["repids_in1"], np.arange(K)] = 1.0
        g2 = np.zeros((self.R2, self.Kp), np.float32)
        g2[p["repids_in2"], np.arange(K)] = 1.0
        s = np.zeros((self.Kp, self.Routp), np.float32)
        s[np.arange(K), p["repids_out"]] = p["cg_tilde"].astype(np.float32)
        self.g1 = jnp.asarray(g1).astype(jnp.bfloat16)
        self.g2 = jnp.asarray(g2).astype(jnp.bfloat16)
        self.s = jnp.asarray(s)

        self._precision = _resolve_dot_precision()     # HIGH if lowers, else HIGHEST
        self._fn_cache = {}

    # -----------------------------------------------------------------------
    def _pick_batch_tile(self, B):
        tb = min(self.TB_MAX, _round_up(max(B, 1), 8))
        if self._split_batch_for_cores and B > 8:
            # v7x shards the "parallel" batch axis across its 2 TensorCores; make
            # sure there are >= 2 batch tiles so neither core sits idle.
            if _round_up(B, tb) // tb < 2:
                tb = max(8, _round_up(-(-B // 2), 8))
        return tb

    def _build(self, Bp, tb):
        key = (Bp, tb)
        fn = self._fn_cache.get(key)
        if fn is not None:
            return fn
        n_b = Bp // tb
        n_k = self.Kp // self.TK
        R1, R2, Routp, TK = self.R1, self.R2, self.Routp, self.TK

        flops = 2 * Bp * self.Kp * (R1 + R2 + Routp)
        const_bytes = self.Kp * (2 * R1 + 2 * R2 + 4 * Routp)
        io_bytes = 4 * Bp * (R1 + R2 + Routp)
        # when K is tiled, the constant set is re-streamed once per batch tile
        bytes_accessed = io_bytes + const_bytes * (n_b if n_k > 1 else 1)

        kernel = functools.partial(_cgp_kernel, precision=self._precision)
        pc = pl.pallas_call(
            kernel,
            out_shape=jax.ShapeDtypeStruct((Bp, Routp), jnp.float32),
            grid_spec=pltpu.PrefetchScalarGridSpec(
                num_scalar_prefetch=0,
                grid=(n_b, n_k),
                in_specs=[
                    pl.BlockSpec((tb, R1), lambda i, k: (i, 0)),
                    pl.BlockSpec((tb, R2), lambda i, k: (i, 0)),
                    pl.BlockSpec((R1, TK), lambda i, k: (0, k)),
                    pl.BlockSpec((R2, TK), lambda i, k: (0, k)),
                    pl.BlockSpec((TK, Routp), lambda i, k: (k, 0)),
                ],
                out_specs=pl.BlockSpec((tb, Routp), lambda i, k: (i, 0)),
            ),
            compiler_params=pltpu.CompilerParams(
                dimension_semantics=("parallel", "arbitrary"),
                vmem_limit_bytes=self.VMEM_LIMIT),
            cost_estimate=pl.CostEstimate(
                flops=flops, transcendentals=0, bytes_accessed=bytes_accessed),
        )
        fn = jax.jit(pc)
        self._fn_cache[key] = fn
        return fn

    def __call__(self, x1, x2):
        assert x1.shape[-1] == self.R1 and x2.shape[-1] == self.R2
        assert x1.shape[:-1] == x2.shape[:-1]
        batch_shape = x1.shape[:-1]
        B = int(np.prod(batch_shape)) if batch_shape else 1
        tb = self._pick_batch_tile(B)
        Bp = _round_up(max(B, 1), tb)

        x1f = x1.reshape(B, self.R1).astype(jnp.float32)
        x2f = x2.reshape(B, self.R2).astype(jnp.float32)
        if Bp != B:   # batch padding only; feature dims are used at exact size
            x1f = jnp.pad(x1f, ((0, Bp - B), (0, 0)))
            x2f = jnp.pad(x2f, ((0, Bp - B), (0, 0)))

        out = self._build(Bp, tb)(x1f, x2f, self.g1, self.g2, self.s)
        return out[:B, :self.Rout].reshape(*batch_shape, self.Rout)


if __name__ == "__main__":
    # small, even-length metadata (max_l = 2); overlap_out=False for a consistent layout
    metadata_1 = [2, 1, 2, 1, 1, 1]
    metadata_2 = [1, 2, 1, 2, 1, 1]
    coupler = ModCGPCouplerPallas(metadata_1, metadata_2, overlap_out=False, trunc_in=True)

    key = jax.random.PRNGKey(0)
    k1, k2 = jax.random.split(key)
    B = 4
    x1 = jax.random.normal(k1, (B, coupler.R1), dtype=jnp.float32)
    x2 = jax.random.normal(k2, (B, coupler.R2), dtype=jnp.float32)

    out = jax.block_until_ready(coupler(x1, x2))

    # pure-JAX reference mirroring torch index_select / index_add_ (f32; the torch
    # module defaults to float64 which the TPU MXU cannot do -> rtol 1e-3 tolerance)
    p = coupler.params
    cg = jnp.asarray(p["cg_tilde"], jnp.float32)
    r1 = jnp.asarray(p["repids_in1"])
    r2 = jnp.asarray(p["repids_in2"])
    ro = jnp.asarray(p["repids_out"])
    out_tilde = x1[:, r1] * x2[:, r2] * cg[None, :]
    ref = jnp.zeros((B, p["dim_out"]), jnp.float32).at[:, ro].add(out_tilde)

    np.testing.assert_allclose(np.asarray(out), np.asarray(ref), rtol=1e-3, atol=1e-4)
    print("KERNEL_OK")
</pallas_src>

<mosaic_0001>
module attributes {stable_mosaic.version = 11 : i64} {
  func.func @_cgp_kernel(%arg0: i32, %arg1: i32, %arg2: memref<8x22xf32, #tpu.memory_space<vmem>>, %arg3: memref<8x22xf32, #tpu.memory_space<vmem>>, %arg4: memref<22x256xbf16, #tpu.memory_space<vmem>>, %arg5: memref<22x256xbf16, #tpu.memory_space<vmem>>, %arg6: memref<256x256xf32, #tpu.memory_space<vmem>>, %arg7: memref<8x256xf32, #tpu.memory_space<vmem>>) attributes {dimension_semantics = [#tpu.dimension_semantics<parallel>, #tpu.dimension_semantics<arbitrary>], iteration_bounds = array<i64: 1, 1>, scalar_prefetch = 0 : i64, scratch_operands = 0 : i64, tpu.core_type = #tpu.core_type<tc>, window_params = [{transform_indices = @transform_0, window_bounds = array<i64: 8, 22>}, {transform_indices = @transform_1, window_bounds = array<i64: 8, 22>}, {transform_indices = @transform_2, window_bounds = array<i64: 22, 256>}, {transform_indices = @transform_3, window_bounds = array<i64: 22, 256>}, {transform_indices = @transform_4, window_bounds = array<i64: 256, 256>}, {transform_indices = @transform_5, window_bounds = array<i64: 8, 256>}]} {
    %c0_i32 = arith.constant 0 : i32
    %0 = arith.cmpi eq, %arg1, %c0_i32 : i32
    %1 = arith.extui %0 : i1 to i32
    %c0_i32_0 = arith.constant 0 : i32
    %2 = arith.cmpi ne, %1, %c0_i32_0 : i32
    scf.if %2 {
      %cst_16 = arith.constant 0.000000e+00 : f32
      %17 = vector.broadcast %cst_16 : f32 to vector<8x256xf32>
      %c0_17 = arith.constant 0 : index
      %c0_18 = arith.constant 0 : index
      %18 = vector.load %arg7[%c0_17, %c0_18] : memref<8x256xf32, #tpu.memory_space<vmem>>, vector<8x256xf32>
      tpu.vector_store %arg7[%c0_17, %c0_18], %17 {strides = array<i32>} : memref<8x256xf32, #tpu.memory_space<vmem>>, vector<8x256xf32>,
    } else {
    }
    %c0 = arith.constant 0 : index
    %c0_1 = arith.constant 0 : index
    %3 = vector.load %arg4[%c0, %c0_1] : memref<22x256xbf16, #tpu.memory_space<vmem>>, vector<22x256xbf16>
    %4 = arith.extf %3 : vector<22x256xbf16> to vector<22x256xf32>
    %c0_2 = arith.constant 0 : index
    %c0_3 = arith.constant 0 : index
    %5 = vector.load %arg5[%c0_2, %c0_3] : memref<22x256xbf16, #tpu.memory_space<vmem>>, vector<22x256xbf16>
    %6 = arith.extf %5 : vector<22x256xbf16> to vector<22x256xf32>
    %c0_4 = arith.constant 0 : index
    %c0_5 = arith.constant 0 : index
    %7 = vector.load %arg2[%c0_4, %c0_5] : memref<8x22xf32, #tpu.memory_space<vmem>>, vector<8x22xf32>
    %cst = arith.constant dense<0.000000e+00> : vector<8x256xf32>
    %8 = tpu.matmul %7, %4, %cst {dimension_numbers = #tpu.dot_dimension_numbers<[1], [0], [0], [1], [0, 0, 1, 1], [], []>, precision = #tpu.contract_precision<fp32>} : vector<8x22xf32>, vector<22x256xf32>, vector<8x256xf32> -> vector<8x256xf32>
    %c0_6 = arith.constant 0 : index
    %c0_7 = arith.constant 0 : index
    %9 = vector.load %arg3[%c0_6, %c0_7] : memref<8x22xf32, #tpu.memory_space<vmem>>, vector<8x22xf32>
    %cst_8 = arith.constant dense<0.000000e+00> : vector<8x256xf32>
    %10 = tpu.matmul %9, %6, %cst_8 {dimension_numbers = #tpu.dot_dimension_numbers<[1], [0], [0], [1], [0, 0, 1, 1], [], []>, precision = #tpu.contract_precision<fp32>} : vector<8x22xf32>, vector<22x256xf32>, vector<8x256xf32> -> vector<8x256xf32>
    %c0_9 = arith.constant 0 : index
    %c0_10 = arith.constant 0 : index
    %11 = vector.load %arg7[%c0_9, %c0_10] : memref<8x256xf32, #tpu.memory_space<vmem>>, vector<8x256xf32>
    %12 = arith.mulf %8, %10 : vector<8x256xf32>
    %c0_11 = arith.constant 0 : index
    %c0_12 = arith.constant 0 : index
    %13 = vector.load %arg6[%c0_11, %c0_12] : memref<256x256xf32, #tpu.memory_space<vmem>>, vector<256x256xf32>
    %cst_13 = arith.constant dense<0.000000e+00> : vector<8x256xf32>
    %14 = tpu.matmul %12, %13, %cst_13 {dimension_numbers = #tpu.dot_dimension_numbers<[1], [0], [0], [1], [0, 0, 1, 1], [], []>, precision = #tpu.contract_precision<fp32>} : vector<8x256xf32>, vector<256x256xf32>, vector<8x256xf32> -> vector<8x256xf32>
    %15 = arith.addf %11, %14 : vector<8x256xf32>
    %c0_14 = arith.constant 0 : index
    %c0_15 = arith.constant 0 : index
    %16 = vector.load %arg7[%c0_14, %c0_15] : memref<8x256xf32, #tpu.memory_space<vmem>>, vector<8x256xf32>
    tpu.vector_store %arg7[%c0_14, %c0_15], %15 {strides = array<i32>} : memref<8x256xf32, #tpu.memory_space<vmem>>, vector<8x256xf32>,
    return
  }
  func.func @transform_0(%arg0: i32, %arg1: i32) -> (i32, i32) {
    %c0_i32 = arith.constant 0 : i32
    %c0_i32_0 = arith.constant 0 : i32
    return %arg0, %c0_i32 : i32, i32
  }
  func.func @transform_1(%arg0: i32, %arg1: i32) -> (i32, i32) {
    %c0_i32 = arith.constant 0 : i32
    %c0_i32_0 = arith.constant 0 : i32
    return %arg0, %c0_i32 : i32, i32
  }
  func.func @transform_2(%arg0: i32, %arg1: i32) -> (i32, i32) {
    %c0_i32 = arith.constant 0 : i32
    %c0_i32_0 = arith.constant 0 : i32
    return %c0_i32, %arg1 : i32, i32
  }
  func.func @transform_3(%arg0: i32, %arg1: i32) -> (i32, i32) {
    %c0_i32 = arith.constant 0 : i32
    %c0_i32_0 = arith.constant 0 : i32
    return %c0_i32, %arg1 : i32, i32
  }
  func.func @transform_4(%arg0: i32, %arg1: i32) -> (i32, i32) {
    %c0_i32 = arith.constant 0 : i32
    %c0_i32_0 = arith.constant 0 : i32
    return %arg1, %c0_i32 : i32, i32
  }
  func.func @transform_5(%arg0: i32, %arg1: i32) -> (i32, i32) {
    %c0_i32 = arith.constant 0 : i32
    %c0_i32_0 = arith.constant 0 : i32
    return %arg0, %c0_i32 : i32, i32
  }
}

</mosaic_0001>

<llo_original>
// kernel: tpu_custom_call.1
$region0: #{tpu_custom_call.1}
  #allocation0 [shape = 'u32[]', space=smem, size = 0x4, offset = 0x4, fixed_abs, tag = 'smem constant byte address 0x4 - core index']
  #allocation1 [shape = 'u32[144,128]{1,0:T(1,128)}', space=vmem, size = 0x12000, scoped, tag = 'internal scratch']
  %s0 = inlined_call_operand.hbm [shape: f32[8,22], index: 0, kind: input, shape index: {}]
  %s1 = inlined_call_operand.hbm [shape: f32[8,22], index: 1, kind: input, shape index: {}]
  %s2 = inlined_call_operand.hbm [shape: bf16[22,256], index: 2, kind: input, shape index: {}]
  %s3 = inlined_call_operand.hbm [shape: bf16[22,256], index: 3, kind: input, shape index: {}]
  %s4 = inlined_call_operand.hbm [shape: f32[256,256], index: 4, kind: input, shape index: {}]
  %s5 = inlined_call_operand.hbm [shape: f32[8,256], index: 5, kind: output, shape index: {}]
  %s6 = sld [smem:[#allocation0]]
  $region54: #{tpu_custom_call.1} parent=0
    _
  %s8 = ssub.s32 1, %s6
  %s9 = scalar_select 0, %s8, %s6
  $region1: #{tpu_custom_call.1} parent=0
    #allocation2 [shape = 'u8[4096]{0}', space=vmem, size = 0x1000, scoped, tag = 'input window, operand 0, single buffered']
    #allocation3 [shape = 's32[1]{0}', space=sflag, size = 0x4, scoped, tag = 'scoped memory for tpu_custom_call.1']
    #allocation4 [shape = 's32[1]{0}', space=sflag, size = 0x4, scoped, tag = 'scoped memory for tpu_custom_call.1']
    #allocation5 [shape = 'u8[4096]{0}', space=vmem, size = 0x1000, scoped, tag = 'input window, operand 1, single buffered']
    #allocation6 [shape = 's32[1]{0}', space=sflag, size = 0x4, scoped, tag = 'scoped memory for tpu_custom_call.1']
    #allocation7 [shape = 'u8[12288]{0}', space=vmem, size = 0x3000, scoped, tag = 'input window, operand 2, single buffered']
    #allocation8 [shape = 'u8[12288]{0}', space=vmem, size = 0x3000, scoped, tag = 'input window, operand 3, single buffered']
    #allocation9 [shape = 's32[1]{0}', space=sflag, size = 0x4, scoped, tag = 'scoped memory for tpu_custom_call.1']
    #allocation10 [shape = 'u8[262144]{0}', space=vmem, size = 0x40000, scoped, tag = 'input window, operand 4, single buffered']
    #allocation11 [shape = 'u8[8192]{0}', space=vmem, size = 0x2000, scoped, tag = 'output window, operand 0, single buffered']
    %10 = vsyncpa [#allocation3], 0
    %11 = vsyncpa [#allocation6], 0
    %12 = vsyncpa [#allocation9], 0
    %13 = vsyncpa [#allocation4], 0
    // Predicated region
    $region2: #{tpu_custom_call.1} parent=1 // pred_check
      _
    $region3: #{tpu_custom_call.1} parent=1 // pred_check_branch
      %15 = sbr.rel (0) target = $region5
    $region4: #{tpu_custom_call.1} parent=1 // pred_region
      %s17 = ssub.s32 128, 128
      %18 = vsyncadd [#allocation3], %s17
      %s20 = sshll.u32 [#allocation2], 4
      %s21 = int_to_ptr.vmem [resolvable:$true] %s20
      %23 = dma.hbm_to_vmem [thread:$0]  %s0, 128, %s21, [#allocation3]
    $region5: #{tpu_custom_call.1} parent=1 // pred_fallthru
      _
    // Predicated region
    $region6: #{tpu_custom_call.1} parent=1 // pred_check
      _
    $region7: #{tpu_custom_call.1} parent=1 // pred_check_branch
      %25 = sbr.rel (0) target = $region9
    $region8: #{tpu_custom_call.1} parent=1 // pred_region
      %s27 = ssub.s32 128, 128
      %28 = vsyncadd [#allocation6], %s27
      %s30 = sshll.u32 [#allocation5], 4
      %s31 = int_to_ptr.vmem [resolvable:$true] %s30
      %33 = dma.hbm_to_vmem [thread:$0]  %s1, 128, %s31, [#allocation6]
    $region9: #{tpu_custom_call.1} parent=1 // pred_fallthru
      _
    // Predicated region
    $region10: #{tpu_custom_call.1} parent=1 // pred_check
      _
    $region11: #{tpu_custom_call.1} parent=1 // pred_check_branch
      %35 = sbr.rel (0) target = $region13
    $region12: #{tpu_custom_call.1} parent=1 // pred_region
      %s37 = ssub.s32 384, 384
      %38 = vsyncadd [#allocation6], %s37
      %s39 = sshll.u32 [#allocation7], 4
      %s40 = int_to_ptr.vmem [resolvable:$true] %s39
      %45 = dma.hbm_to_vmem [thread:$0]  %s2, 384, %s40, [#allocation6], 128, 128, 8
    $region13: #{tpu_custom_call.1} parent=1 // pred_fallthru
      _
    // Predicated region
    $region14: #{tpu_custom_call.1} parent=1 // pred_check
      _
    $region15: #{tpu_custom_call.1} parent=1 // pred_check_branch
      %47 = sbr.rel (0) target = $region17
    $region16: #{tpu_custom_call.1} parent=1 // pred_region
      %s49 = ssub.s32 384, 384
      %50 = vsyncadd [#allocation9], %s49
      %s51 = sshll.u32 [#allocation8], 4
      %s52 = int_to_ptr.vmem [resolvable:$true] %s51
      %57 = dma.hbm_to_vmem [thread:$0]  %s3, 384, %s52, [#allocation9], 128, 128, 8
    $region17: #{tpu_custom_call.1} parent=1 // pred_fallthru
      _
    // Predicated region
    $region18: #{tpu_custom_call.1} parent=1 // pred_check
      _
    $region19: #{tpu_custom_call.1} parent=1 // pred_check_branch
      %59 = sbr.rel (0) target = $region21
    $region20: #{tpu_custom_call.1} parent=1 // pred_region
      %s61 = ssub.s32 8192, 8192
      %62 = vsyncadd [#allocation9], %s61
      %s63 = sshll.u32 [#allocation10], 4
      %s64 = int_to_ptr.vmem [resolvable:$true] %s63
      %69 = dma.hbm_to_vmem [thread:$0]  %s4, 8192, %s64, [#allocation9], 256, 256, 16
    $region21: #{tpu_custom_call.1} parent=1 // pred_fallthru
      _
    // Predicated region
    $region22: #{tpu_custom_call.1} parent=1 // pred_check
      _
    $region23: #{tpu_custom_call.1} parent=1 // pred_check_branch
      %71 = sbr.rel (0) target = $region25
    $region24: #{tpu_custom_call.1} parent=1 // pred_region
      %72 = dma.done [#allocation3], 128
    $region25: #{tpu_custom_call.1} parent=1 // pred_fallthru
      _
    // Predicated region
    $region26: #{tpu_custom_call.1} parent=1 // pred_check
      _
    $region27: #{tpu_custom_call.1} parent=1 // pred_check_branch
      %74 = sbr.rel (0) target = $region29
    $region28: #{tpu_custom_call.1} parent=1 // pred_region
      %75 = dma.done [#allocation6], 128
    $region29: #{tpu_custom_call.1} parent=1 // pred_fallthru
      _
    // Predicated region
    $region30: #{tpu_custom_call.1} parent=1 // pred_check
      _
    $region31: #{tpu_custom_call.1} parent=1 // pred_check_branch
      %77 = sbr.rel (0) target = $region33
    $region32: #{tpu_custom_call.1} parent=1 // pred_region
      %78 = dma.done [#allocation6], 384
    $region33: #{tpu_custom_call.1} parent=1 // pred_fallthru
      _
    // Predicated region
    $region34: #{tpu_custom_call.1} parent=1 // pred_check
      _
    $region35: #{tpu_custom_call.1} parent=1 // pred_check_branch
      %80 = sbr.rel (0) target = $region37
    $region36: #{tpu_custom_call.1} parent=1 // pred_region
      %81 = dma.done [#allocation9], 384
    $region37: #{tpu_custom_call.1} parent=1 // pred_fallthru
      _
    // Predicated region
    $region38: #{tpu_custom_call.1} parent=1 // pred_check
      _
    $region39: #{tpu_custom_call.1} parent=1 // pred_check_branch
      %83 = sbr.rel (0) target = $region41
    $region40: #{tpu_custom_call.1} parent=1 // pred_region
      %84 = dma.done [#allocation9], 8192
    $region41: #{tpu_custom_call.1} parent=1 // pred_fallthru
      _
    %p85 = scmp.eq.s32.totalorder 0, 0
    // Predicated region
    $region42: #{tpu_custom_call.1} parent=1 // pred_check
      %p86 = pneg %p85
    $region43: #{tpu_custom_call.1} parent=1 // pred_check_branch
      %88 = sbr.rel (%p86) target = $region45
    $region44: #{tpu_custom_call.1} parent=1 // pred_region
      %89 = vst [vmem:[#allocation11] sm:$0xff] 0.0
      %90 = vst [vmem:[#allocation11 + $0x8] sm:$0xff] 0.0
    $region45: #{tpu_custom_call.1} parent=1 // pred_fallthru
      _
    %v91 = vld [vmem:[#allocation7] sm:$0xff]
    %v92 = vld [vmem:[#allocation7 + $0x8] sm:$0xff]
    %v93 = vld [vmem:[#allocation7 + $0x10] sm:$0x77]
    %v94 = vunpack.c.l.bf16 %v91
    %v95 = vunpack.c.h.bf16 %v91
    %v96 = vunpack.c.l.bf16 %v92
    %v97 = vunpack.c.h.bf16 %v92
    %v98 = vunpack.c.l.bf16 %v93
    %v99 = vunpack.c.h.bf16 %v93
    %v100 = vld [vmem:[#allocation8] sm:$0xff]
    %v101 = vld [vmem:[#allocation8 + $0x8] sm:$0xff]
    %v102 = vld [vmem:[#allocation8 + $0x10] sm:$0x77]
    %v103 = vunpack.c.l.bf16 %v100
    %v104 = vunpack.c.h.bf16 %v100
    %v105 = vunpack.c.l.bf16 %v101
    %v106 = vunpack.c.h.bf16 %v101
    %v107 = vunpack.c.l.bf16 %v102
    %v108 = vunpack.c.h.bf16 %v102
    %v109 = vld [vmem:[#allocation2] sm:$0xff]
    %vm110 = vcmask 179200
    %v112 = vsel %vm110, %v109, 0
    %vm114 = vcmask 1045504
    %v116 = vsel %vm114, %v98, 0
    %v119 = vsel %vm114, %v99, 0
    %121 = vmatprep.subr.mxu0 %v95
    %122 = vmatpush1.msra.mxu0 %v94
    %123 = vmatprep.subr.mxu0 %v97
    %124 = vmatpush1.msra.mxu0 %v96
    %v125 = vand.u32 %v119, 4294901760
    %126 = vmatprep.subr.mxu0 %v125
    %v127 = vand.u32 %v116, 4294901760
    %128 = vmatpush1.msra.mxu0 %v127
    %129 = vmatprep.subr.mxu0 0.0
    %130 = vmatpush1.msra.mxu0 0.0
    %131 = vmatprep.subr.mxu0 0.0
    %132 = vmatpush1.msra.mxu0 0.0
    %133 = vmatprep.subr.mxu0 0.0
    %134 = vmatpush1.msra.mxu0 0.0
    %135 = vmatprep.subr.mxu0 0.0
    %136 = vmatpush1.msra.mxu0 0.0
    %137 = vmatprep.subr.mxu0 0.0
    %138 = vmatpush1.msra.mxu0 0.0
    %139 = vmatprep.subr.mxu0 0.0
    %140 = vmatpush1.msra.mxu0 0.0
    %141 = vmatprep.subr.mxu0 0.0
    %142 = vmatpush1.msra.mxu0 0.0
    %143 = vmatprep.subr.mxu0 0.0
    %144 = vmatpush1.msra.mxu0 0.0
    %145 = vmatprep.subr.mxu0 0.0
    %146 = vmatpush1.msra.mxu0 0.0
    %147 = vmatprep.subr.mxu0 0.0
    %148 = vmatpush1.msra.mxu0 0.0
    %149 = vmatprep.subr.mxu0 0.0
    %150 = vmatpush1.msra.mxu0 0.0
    %151 = vmatprep.subr.mxu0 0.0
    %152 = vmatpush1.msra.mxu0 0.0
    %153 = vmatprep.subr.mxu0 0.0
    %154 = vmatpush1.msra.mxu0 0.0
    %155 = vmatprep.subr.mxu0 0.0
    %156 = vmatpush1.msra.mxu0 0.0
    %157 = vmatprep.subr.mxu0 0.0
    %158 = vmatpush1.msra.mxu0 0.0
    %159 = vmatprep.subr.mxu0 0.0
    %160 = vmatpush1.msra.mxu0 0.0
    %161 = vmatprep.subr.mxu0 0.0
    %162 = vmatpush1.msra.mxu0 0.0
    %163 = vmatprep.subr.mxu0 0.0
    %164 = vmatpush1.msra.mxu0 0.0
    %165 = vmatprep.subr.mxu0 0.0
    %166 = vmatpush1.msra.mxu0 0.0
    %167 = vmatprep.subr.mxu0 0.0
    %168 = vmatpush1.msra.mxu0 0.0
    %169 = vmatprep.subr.mxu0 0.0
    %170 = vmatpush1.msra.mxu0 0.0
    %171 = vmatprep.subr.mxu0 0.0
    %172 = vmatpush1.msra.mxu0 0.0
    %173 = vmatprep.subr.mxu0 0.0
    %174 = vmatpush1.msra.mxu0 0.0
    %175 = vmatprep.subr.mxu0 0.0
    %176 = vmatpush1.msra.mxu0 0.0
    %177 = vmatprep.subr.mxu0 0.0
    %178 = vmatpush1.msra.mxu0 0.0
    %179 = vmatprep.subr.mxu0 0.0
    %180 = vmatpush1.msra.mxu0 0.0
    %181 = vmatprep.subr.mxu0 0.0
    %182 = vmatpush1.msra.mxu0 0.0
    %183 = vmatprep.subr.mxu0 0.0
    %184 = vmatpush1.msra.mxu0 0.0
    %185 = vmatprep.subr.mxu0 0.0
    %186 = vmatpush1.msra.mxu0 0.0
    %187 = vmatprep.mubr.f32.mxu0 0.0
    %v188 = vand.u32 %v112, 4294901760
    %v189 = vsub.f32 %v112, %v188
    %v190 = vand.u32 %v189, 4294901760
    %v191 = vsub.f32 %v189, %v190
    %v192 = vand.u32 %v191, 4294901760
    %193 = vmatmul.mubr.f32.gmra.mrb[0].mxu0 %v192
    %v194 = vpop.f32.mrb[0].mxu0
    %v195 = vadd.f32 0.0, %v194
    %v196 = vpop.f32.mrb[0].mxu0
    %v197 = vadd.f32 0.0, %v196
    %198 = vdwg.mxu0
    %v199 = vsub.f32 %v95, %v95
    %v200 = vand.u32 %v199, 4294901760
    %v201 = vsub.f32 %v199, %v200
    %v202 = vand.u32 %v201, 4294901760
    %203 = vmatprep.subr.mxu0 %v202
    %v204 = vsub.f32 %v94, %v94
    %v205 = vand.u32 %v204, 4294901760
    %v206 = vsub.f32 %v204, %v205
    %v207 = vand.u32 %v206, 4294901760
    %208 = vmatpush1.msra.mxu0 %v207
    %v209 = vsub.f32 %v97, %v97
    %v210 = vand.u32 %v209, 4294901760
    %v211 = vsub.f32 %v209, %v210
    %v212 = vand.u32 %v211, 4294901760
    %213 = vmatprep.subr.mxu0 %v212
    %v214 = vsub.f32 %v96, %v96
    %v215 = vand.u32 %v214, 4294901760
    %v216 = vsub.f32 %v214, %v215
    %v217 = vand.u32 %v216, 4294901760
    %218 = vmatpush1.msra.mxu0 %v217
    %v219 = vand.u32 %v119, 4294901760
    %v220 = vsub.f32 %v119, %v219
    %v221 = vand.u32 %v220, 4294901760
    %v222 = vsub.f32 %v220, %v221
    %v223 = vand.u32 %v222, 4294901760
    %224 = vmatprep.subr.mxu0 %v223
    %v225 = vand.u32 %v116, 4294901760
    %v226 = vsub.f32 %v116, %v225
    %v227 = vand.u32 %v226, 4294901760
    %v228 = vsub.f32 %v226, %v227
    %v229 = vand.u32 %v228, 4294901760
    %230 = vmatpush1.msra.mxu0 %v229
    %231 = vmatprep.subr.mxu0 0.0
    %232 = vmatpush1.msra.mxu0 0.0
    %233 = vmatprep.subr.mxu0 0.0
    %234 = vmatpush1.msra.mxu0 0.0
    %235 = vmatprep.subr.mxu0 0.0
    %236 = vmatpush1.msra.mxu0 0.0
    %237 = vmatprep.subr.mxu0 0.0
    %238 = vmatpush1.msra.mxu0 0.0
    %239 = vmatprep.subr.mxu0 0.0
    %240 = vmatpush1.msra.mxu0 0.0
    %241 = vmatprep.subr.mxu0 0.0
    %242 = vmatpush1.msra.mxu0 0.0
    %243 = vmatprep.subr.mxu0 0.0
    %244 = vmatpush1.msra.mxu0 0.0
    %245 = vmatprep.subr.mxu0 0.0
    %246 = vmatpush1.msra.mxu0 0.0
    %247 = vmatprep.subr.mxu0 0.0
    %248 = vmatpush1.msra.mxu0 0.0
    %249 = vmatprep.subr.mxu0 0.0
    %250 = vmatpush1.msra.mxu0 0.0
    %251 = vmatprep.subr.mxu0 0.0
    %252 = vmatpush1.msra.mxu0 0.0
    %253 = vmatprep.subr.mxu0 0.0
    %254 = vmatpush1.msra.mxu0 0.0
    %255 = vmatprep.subr.mxu0 0.0
    %256 = vmatpush1.msra.mxu0 0.0
    %257 = vmatprep.subr.mxu0 0.0
    %258 = vmatpush1.msra.mxu0 0.0
    %259 = vmatprep.subr.mxu0 0.0
    %260 = vmatpush1.msra.mxu0 0.0
    %261 = vmatprep.subr.mxu0 0.0
    %262 = vmatpush1.msra.mxu0 0.0
    %263 = vmatprep.subr.mxu0 0.0
    %264 = vmatpush1.msra.mxu0 0.0
    %265 = vmatprep.subr.mxu0 0.0
    %266 = vmatpush1.msra.mxu0 0.0
    %267 = vmatprep.subr.mxu0 0.0
    %268 = vmatpush1.msra.mxu0 0.0
    %269 = vmatprep.subr.mxu0 0.0
    %270 = vmatpush1.msra.mxu0 0.0
    %271 = vmatprep.subr.mxu0 0.0
    %272 = vmatpush1.msra.mxu0 0.0
    %273 = vmatprep.subr.mxu0 0.0
    %274 = vmatpush1.msra.mxu0 0.0
    %275 = vmatprep.subr.mxu0 0.0
    %276 = vmatpush1.msra.mxu0 0.0
    %277 = vmatprep.subr.mxu0 0.0
    %278 = vmatpush1.msra.mxu0 0.0
    %279 = vmatprep.subr.mxu0 0.0
    %280 = vmatpush1.msra.mxu0 0.0
    %281 = vmatprep.subr.mxu0 0.0
    %282 = vmatpush1.msra.mxu0 0.0
    %283 = vmatprep.subr.mxu0 0.0
    %284 = vmatpush1.msra.mxu0 0.0
    %285 = vmatprep.subr.mxu0 0.0
    %286 = vmatpush1.msra.mxu0 0.0
    %287 = vmatprep.subr.mxu0 0.0
    %288 = vmatpush1.msra.mxu0 0.0
    %289 = vmatprep.mubr.f32.mxu0 0.0
    %v290 = vand.u32 %v112, 4294901760
    %291 = vmatmul.mubr.f32.gmra.mrb[0].mxu0 %v290
    %v292 = vpop.f32.mrb[0].mxu0
    %v293 = vadd.f32 %v195, %v292
    %v294 = vpop.f32.mrb[0].mxu0
    %v295 = vadd.f32 %v197, %v294
    %296 = vdwg.mxu0
    %v297 = vsub.f32 %v95, %v95
    %298 = vmatprep.subr.mxu0 %v297
    %v299 = vsub.f32 %v94, %v94
    %300 = vmatpush1.msra.mxu0 %v299
    %v301 = vsub.f32 %v97, %v97
    %302 = vmatprep.subr.mxu0 %v301
    %v303 = vsub.f32 %v96, %v96
    %304 = vmatpush1.msra.mxu0 %v303
    %v305 = vand.u32 %v119, 4294901760
    %v306 = vsub.f32 %v119, %v305
    %307 = vmatprep.subr.mxu0 %v306
    %v308 = vand.u32 %v116, 4294901760
    %v309 = vsub.f32 %v116, %v308
    %310 = vmatpush1.msra.mxu0 %v309
    %311 = vmatprep.subr.mxu0 0.0
    %312 = vmatpush1.msra.mxu0 0.0
    %313 = vmatprep.subr.mxu0 0.0
    %314 = vmatpush1.msra.mxu0 0.0
    %315 = vmatprep.subr.mxu0 0.0
    %316 = vmatpush1.msra.mxu0 0.0
    %317 = vmatprep.subr.mxu0 0.0
    %318 = vmatpush1.msra.mxu0 0.0
    %319 = vmatprep.subr.mxu0 0.0
    %320 = vmatpush1.msra.mxu0 0.0
    %321 = vmatprep.subr.mxu0 0.0
    %322 = vmatpush1.msra.mxu0 0.0
    %323 = vmatprep.subr.mxu0 0.0
    %324 = vmatpush1.msra.mxu0 0.0
    %325 = vmatprep.subr.mxu0 0.0
    %326 = vmatpush1.msra.mxu0 0.0
    %327 = vmatprep.subr.mxu0 0.0
    %328 = vmatpush1.msra.mxu0 0.0
    %329 = vmatprep.subr.mxu0 0.0
    %330 = vmatpush1.msra.mxu0 0.0
    %331 = vmatprep.subr.mxu0 0.0
    %332 = vmatpush1.msra.mxu0 0.0
    %333 = vmatprep.subr.mxu0 0.0
    %334 = vmatpush1.msra.mxu0 0.0
    %335 = vmatprep.subr.mxu0 0.0
    %336 = vmatpush1.msra.mxu0 0.0
    %337 = vmatprep.subr.mxu0 0.0
    %338 = vmatpush1.msra.mxu0 0.0
    %339 = vmatprep.subr.mxu0 0.0
    %340 = vmatpush1.msra.mxu0 0.0
    %341 = vmatprep.subr.mxu0 0.0
    %342 = vmatpush1.msra.mxu0 0.0
    %343 = vmatprep.subr.mxu0 0.0
    %344 = vmatpush1.msra.mxu0 0.0
    %345 = vmatprep.subr.mxu0 0.0
    %346 = vmatpush1.msra.mxu0 0.0
    %347 = vmatprep.subr.mxu0 0.0
    %348 = vmatpush1.msra.mxu0 0.0
    %349 = vmatprep.subr.mxu0 0.0
    %350 = vmatpush1.msra.mxu0 0.0
    %351 = vmatprep.subr.mxu0 0.0
    %352 = vmatpush1.msra.mxu0 0.0
    %353 = vmatprep.subr.mxu0 0.0
    %354 = vmatpush1.msra.mxu0 0.0
    %355 = vmatprep.subr.mxu0 0.0
    %356 = vmatpush1.msra.mxu0 0.0
    %357 = vmatprep.subr.mxu0 0.0
    %358 = vmatpush1.msra.mxu0 0.0
    %359 = vmatprep.subr.mxu0 0.0
    %360 = vmatpush1.msra.mxu0 0.0
    %361 = vmatprep.subr.mxu0 0.0
    %362 = vmatpush1.msra.mxu0 0.0
    %363 = vmatprep.subr.mxu0 0.0
    %364 = vmatpush1.msra.mxu0 0.0
    %365 = vmatprep.subr.mxu0 0.0
    %366 = vmatpush1.msra.mxu0 0.0
    %367 = vmatprep.subr.mxu0 0.0
    %368 = vmatpush1.msra.mxu0 0.0
    %369 = vmatprep.mubr.f32.mxu0 0.0
    %v370 = vand.u32 %v112, 4294901760
    %v371 = vsub.f32 %v112, %v370
    %372 = vmatmul.mubr.f32.gmra.mrb[0].mxu0 %v371
    %v373 = vpop.f32.mrb[0].mxu0
    %v374 = vadd.f32 %v293, %v373
    %v375 = vpop.f32.mrb[0].mxu0
    %v376 = vadd.f32 %v295, %v375
    %377 = vdwg.mxu0
    %378 = vmatprep.subr.mxu0 %v95
    %379 = vmatpush1.msra.mxu0 %v94
    %380 = vmatprep.subr.mxu0 %v97
    %381 = vmatpush1.msra.mxu0 %v96
    %v382 = vand.u32 %v119, 4294901760
    %383 = vmatprep.subr.mxu0 %v382
    %v384 = vand.u32 %v116, 4294901760
    %385 = vmatpush1.msra.mxu0 %v384
    %386 = vmatprep.subr.mxu0 0.0
    %387 = vmatpush1.msra.mxu0 0.0
    %388 = vmatprep.subr.mxu0 0.0
    %389 = vmatpush1.msra.mxu0 0.0
    %390 = vmatprep.subr.mxu0 0.0
    %391 = vmatpush1.msra.mxu0 0.0
    %392 = vmatprep.subr.mxu0 0.0
    %393 = vmatpush1.msra.mxu0 0.0
    %394 = vmatprep.subr.mxu0 0.0
    %395 = vmatpush1.msra.mxu0 0.0
    %396 = vmatprep.subr.mxu0 0.0
    %397 = vmatpush1.msra.mxu0 0.0
    %398 = vmatprep.subr.mxu0 0.0
    %399 = vmatpush1.msra.mxu0 0.0
    %400 = vmatprep.subr.mxu0 0.0
    %401 = vmatpush1.msra.mxu0 0.0
    %402 = vmatprep.subr.mxu0 0.0
    %403 = vmatpush1.msra.mxu0 0.0
    %404 = vmatprep.subr.mxu0 0.0
    %405 = vmatpush1.msra.mxu0 0.0
    %406 = vmatprep.subr.mxu0 0.0
    %407 = vmatpush1.msra.mxu0 0.0
    %408 = vmatprep.subr.mxu0 0.0
    %409 = vmatpush1.msra.mxu0 0.0
    %410 = vmatprep.subr.mxu0 0.0
    %411 = vmatpush1.msra.mxu0 0.0
    %412 = vmatprep.subr.mxu0 0.0
    %413 = vmatpush1.msra.mxu0 0.0
    %414 = vmatprep.subr.mxu0 0.0
    %415 = vmatpush1.msra.mxu0 0.0
    %416 = vmatprep.subr.mxu0 0.0
    %417 = vmatpush1.msra.mxu0 0.0
    %418 = vmatprep.subr.mxu0 0.0
    %419 = vmatpush1.msra.mxu0 0.0
    %420 = vmatprep.subr.mxu0 0.0
    %421 = vmatpush1.msra.mxu0 0.0
    %422 = vmatprep.subr.mxu0 0.0
    %423 = vmatpush1.msra.mxu0 0.0
    %424 = vmatprep.subr.mxu0 0.0
    %425 = vmatpush1.msra.mxu0 0.0
    %426 = vmatprep.subr.mxu0 0.0
    %427 = vmatpush1.msra.mxu0 0.0
    %428 = vmatprep.subr.mxu0 0.0
    %429 = vmatpush1.msra.mxu0 0.0
    %430 = vmatprep.subr.mxu0 0.0
    %431 = vmatpush1.msra.mxu0 0.0
    %432 = vmatprep.subr.mxu0 0.0
    %433 = vmatpush1.msra.mxu0 0.0
    %434 = vmatprep.subr.mxu0 0.0
    %435 = vmatpush1.msra.mxu0 0.0
    %436 = vmatprep.subr.mxu0 0.0
    %437 = vmatpush1.msra.mxu0 0.0
    %438 = vmatprep.subr.mxu0 0.0
    %439 = vmatpush1.msra.mxu0 0.0
    %440 = vmatprep.subr.mxu0 0.0
    %441 = vmatpush1.msra.mxu0 0.0
    %442 = vmatprep.subr.mxu0 0.0
    %443 = vmatpush1.msra.mxu0 0.0
    %444 = vmatprep.mubr.f32.mxu0 0.0
    %v445 = vand.u32 %v112, 4294901760
    %v446 = vsub.f32 %v112, %v445
    %v447 = vand.u32 %v446, 4294901760
    %448 = vmatmul.mubr.f32.gmra.mrb[0].mxu0 %v447
    %v449 = vpop.f32.mrb[0].mxu0
    %v450 = vadd.f32 %v374, %v449
    %v451 = vpop.f32.mrb[0].mxu0
    %v452 = vadd.f32 %v376, %v451
    %453 = vdwg.mxu0
    %v454 = vsub.f32 %v95, %v95
    %v455 = vand.u32 %v454, 4294901760
    %456 = vmatprep.subr.mxu0 %v455
    %v457 = vsub.f32 %v94, %v94
    %v458 = vand.u32 %v457, 4294901760
    %459 = vmatpush1.msra.mxu0 %v458
    %v460 = vsub.f32 %v97, %v97
    %v461 = vand.u32 %v460, 4294901760
    %462 = vmatprep.subr.mxu0 %v461
    %v463 = vsub.f32 %v96, %v96
    %v464 = vand.u32 %v463, 4294901760
    %465 = vmatpush1.msra.mxu0 %v464
    %v466 = vand.u32 %v119, 4294901760
    %v467 = vsub.f32 %v119, %v466
    %v468 = vand.u32 %v467, 4294901760
    %469 = vmatprep.subr.mxu0 %v468
    %v470 = vand.u32 %v116, 4294901760
    %v471 = vsub.f32 %v116, %v470
    %v472 = vand.u32 %v471, 4294901760
    %473 = vmatpush1.msra.mxu0 %v472
    %474 = vmatprep.subr.mxu0 0.0
    %475 = vmatpush1.msra.mxu0 0.0
    %476 = vmatprep.subr.mxu0 0.0
    %477 = vmatpush1.msra.mxu0 0.0
    %478 = vmatprep.subr.mxu0 0.0
    %479 = vmatpush1.msra.mxu0 0.0
    %480 = vmatprep.subr.mxu0 0.0
    %481 = vmatpush1.msra.mxu0 0.0
    %482 = vmatprep.subr.mxu0 0.0
    %483 = vmatpush1.msra.mxu0 0.0
    %484 = vmatprep.subr.mxu0 0.0
    %485 = vmatpush1.msra.mxu0 0.0
    %486 = vmatprep.subr.mxu0 0.0
    %487 = vmatpush1.msra.mxu0 0.0
    %488 = vmatprep.subr.mxu0 0.0
    %489 = vmatpush1.msra.mxu0 0.0
    %490 = vmatprep.subr.mxu0 0.0
    %491 = vmatpush1.msra.mxu0 0.0
    %492 = vmatprep.subr.mxu0 0.0
    %493 = vmatpush1.msra.mxu0 0.0
    %494 = vmatprep.subr.mxu0 0.0
    %495 = vmatpush1.msra.mxu0 0.0
    %496 = vmatprep.subr.mxu0 0.0
    %497 = vmatpush1.msra.mxu0 0.0
    %498 = vmatprep.subr.mxu0 0.0
    %499 = vmatpush1.msra.mxu0 0.0
    %500 = vmatprep.subr.mxu0 0.0
    %501 = vmatpush1.msra.mxu0 0.0
    %502 = vmatprep.subr.mxu0 0.0
    %503 = vmatpush1.msra.mxu0 0.0
    %504 = vmatprep.subr.mxu0 0.0
    %505 = vmatpush1.msra.mxu0 0.0
    %506 = vmatprep.subr.mxu0 0.0
    %507 = vmatpush1.msra.mxu0 0.0
    %508 = vmatprep.subr.mxu0 0.0
    %509 = vmatpush1.msra.mxu0 0.0
    %510 = vmatprep.subr.mxu0 0.0
    %511 = vmatpush1.msra.mxu0 0.0
    %512 = vmatprep.subr.mxu0 0.0
    %513 = vmatpush1.msra.mxu0 0.0
    %514 = vmatprep.subr.mxu0 0.0
    %515 = vmatpush1.msra.mxu0 0.0
    %516 = vmatprep.subr.mxu0 0.0
    %517 = vmatpush1.msra.mxu0 0.0
    %518 = vmatprep.subr.mxu0 0.0
    %519 = vmatpush1.msra.mxu0 0.0
    %520 = vmatprep.subr.mxu0 0.0
    %521 = vmatpush1.msra.mxu0 0.0
    %522 = vmatprep.subr.mxu0 0.0
    %523 = vmatpush1.msra.mxu0 0.0
    %524 = vmatprep.subr.mxu0 0.0
    %525 = vmatpush1.msra.mxu0 0.0
    %526 = vmatprep.subr.mxu0 0.0
    %527 = vmatpush1.msra.mxu0 0.0
    %528 = vmatprep.subr.mxu0 0.0
    %529 = vmatpush1.msra.mxu0 0.0
    %530 = vmatprep.subr.mxu0 0.0
    %531 = vmatpush1.msra.mxu0 0.0
    %532 = vmatprep.mubr.f32.mxu0 0.0
    %v533 = vand.u32 %v112, 4294901760
    %534 = vmatmul.mubr.f32.gmra.mrb[0].mxu0 %v533
    %v535 = vpop.f32.mrb[0].mxu0
    %v536 = vadd.f32 %v450, %v535
    %v537 = vpop.f32.mrb[0].mxu0
    %v538 = vadd.f32 %v452, %v537
    %539 = vdwg.mxu0
    %540 = vmatprep.subr.mxu0 %v95
    %541 = vmatpush1.msra.mxu0 %v94
    %542 = vmatprep.subr.mxu0 %v97
    %543 = vmatpush1.msra.mxu0 %v96
    %v544 = vand.u32 %v119, 4294901760
    %545 = vmatprep.subr.mxu0 %v544
    %v546 = vand.u32 %v116, 4294901760
    %547 = vmatpush1.msra.mxu0 %v546
    %548 = vmatprep.subr.mxu0 0.0
    %549 = vmatpush1.msra.mxu0 0.0
    %550 = vmatprep.subr.mxu0 0.0
    %551 = vmatpush1.msra.mxu0 0.0
    %552 = vmatprep.subr.mxu0 0.0
    %553 = vmatpush1.msra.mxu0 0.0
    %554 = vmatprep.subr.mxu0 0.0
    %555 = vmatpush1.msra.mxu0 0.0
    %556 = vmatprep.subr.mxu0 0.0
    %557 = vmatpush1.msra.mxu0 0.0
    %558 = vmatprep.subr.mxu0 0.0
    %559 = vmatpush1.msra.mxu0 0.0
    %560 = vmatprep.subr.mxu0 0.0
    %561 = vmatpush1.msra.mxu0 0.0
    %562 = vmatprep.subr.mxu0 0.0
    %563 = vmatpush1.msra.mxu0 0.0
    %564 = vmatprep.subr.mxu0 0.0
    %565 = vmatpush1.msra.mxu0 0.0
    %566 = vmatprep.subr.mxu0 0.0
    %567 = vmatpush1.msra.mxu0 0.0
    %568 = vmatprep.subr.mxu0 0.0
    %569 = vmatpush1.msra.mxu0 0.0
    %570 = vmatprep.subr.mxu0 0.0
    %571 = vmatpush1.msra.mxu0 0.0
    %572 = vmatprep.subr.mxu0 0.0
    %573 = vmatpush1.msra.mxu0 0.0
    %574 = vmatprep.subr.mxu0 0.0
    %575 = vmatpush1.msra.mxu0 0.0
    %576 = vmatprep.subr.mxu0 0.0
    %577 = vmatpush1.msra.mxu0 0.0
    %578 = vmatprep.subr.mxu0 0.0
    %579 = vmatpush1.msra.mxu0 0.0
    %580 = vmatprep.subr.mxu0 0.0
    %581 = vmatpush1.msra.mxu0 0.0
    %582 = vmatprep.subr.mxu0 0.0
    %583 = vmatpush1.msra.mxu0 0.0
    %584 = vmatprep.subr.mxu0 0.0
    %585 = vmatpush1.msra.mxu0 0.0
    %586 = vmatprep.subr.mxu0 0.0
    %587 = vmatpush1.msra.mxu0 0.0
    %588 = vmatprep.subr.mxu0 0.0
    %589 = vmatpush1.msra.mxu0 0.0
    %590 = vmatprep.subr.mxu0 0.0
    %591 = vmatpush1.msra.mxu0 0.0
    %592 = vmatprep.subr.mxu0 0.0
    %593 = vmatpush1.msra.mxu0 0.0
    %594 = vmatprep.subr.mxu0 0.0
    %595 = vmatpush1.msra.mxu0 0.0
    %596 = vmatprep.subr.mxu0 0.0
    %597 = vmatpush1.msra.mxu0 0.0
    %598 = vmatprep.subr.mxu0 0.0
    %599 = vmatpush1.msra.mxu0 0.0
    %600 = vmatprep.subr.mxu0 0.0
    %601 = vmatpush1.msra.mxu0 0.0
    %602 = vmatprep.subr.mxu0 0.0
    %603 = vmatpush1.msra.mxu0 0.0
    %604 = vmatprep.subr.mxu0 0.0
    %605 = vmatpush1.msra.mxu0 0.0
    %606 = vmatprep.mubr.f32.mxu0 0.0
    %v607 = vand.u32 %v112, 4294901760
    %608 = vmatmul.mubr.f32.gmra.mrb[0].mxu0 %v607
    %v609 = vpop.f32.mrb[0].mxu0
    %v610 = vadd.f32 %v536, %v609
    %v611 = vpop.f32.mrb[0].mxu0
    %v612 = vadd.f32 %v538, %v611
    %613 = vdwg.mxu0
    %v614 = vld [vmem:[#allocation5] sm:$0xff]
    %v616 = vsel %vm110, %v614, 0
    %v619 = vsel %vm114, %v107, 0
    %v622 = vsel %vm114, %v108, 0
    %624 = vmatprep.subr.mxu0 %v104
    %625 = vmatpush1.msra.mxu0 %v103
    %626 = vmatprep.subr.mxu0 %v106
    %627 = vmatpush1.msra.mxu0 %v105
    %v628 = vand.u32 %v622, 4294901760
    %629 = vmatprep.subr.mxu0 %v628
    %v630 = vand.u32 %v619, 4294901760
    %631 = vmatpush1.msra.mxu0 %v630
    %632 = vmatprep.subr.mxu0 0.0
    %633 = vmatpush1.msra.mxu0 0.0
    %634 = vmatprep.subr.mxu0 0.0
    %635 = vmatpush1.msra.mxu0 0.0
    %636 = vmatprep.subr.mxu0 0.0
    %637 = vmatpush1.msra.mxu0 0.0
    %638 = vmatprep.subr.mxu0 0.0
    %639 = vmatpush1.msra.mxu0 0.0
    %640 = vmatprep.subr.mxu0 0.0
    %641 = vmatpush1.msra.mxu0 0.0
    %642 = vmatprep.subr.mxu0 0.0
    %643 = vmatpush1.msra.mxu0 0.0
    %644 = vmatprep.subr.mxu0 0.0
    %645 = vmatpush1.msra.mxu0 0.0
    %646 = vmatprep.subr.mxu0 0.0
    %647 = vmatpush1.msra.mxu0 0.0
    %648 = vmatprep.subr.mxu0 0.0
    %649 = vmatpush1.msra.mxu0 0.0
    %650 = vmatprep.subr.mxu0 0.0
    %651 = vmatpush1.msra.mxu0 0.0
    %652 = vmatprep.subr.mxu0 0.0
    %653 = vmatpush1.msra.mxu0 0.0
    %654 = vmatprep.subr.mxu0 0.0
    %655 = vmatpush1.msra.mxu0 0.0
    %656 = vmatprep.subr.mxu0 0.0
    %657 = vmatpush1.msra.mxu0 0.0
    %658 = vmatprep.subr.mxu0 0.0
    %659 = vmatpush1.msra.mxu0 0.0
    %660 = vmatprep.subr.mxu0 0.0
    %661 = vmatpush1.msra.mxu0 0.0
    %662 = vmatprep.subr.mxu0 0.0
    %663 = vmatpush1.msra.mxu0 0.0
    %664 = vmatprep.subr.mxu0 0.0
    %665 = vmatpush1.msra.mxu0 0.0
    %666 = vmatprep.subr.mxu0 0.0
    %667 = vmatpush1.msra.mxu0 0.0
    %668 = vmatprep.subr.mxu0 0.0
    %669 = vmatpush1.msra.mxu0 0.0
    %670 = vmatprep.subr.mxu0 0.0
    %671 = vmatpush1.msra.mxu0 0.0
    %672 = vmatprep.subr.mxu0 0.0
    %673 = vmatpush1.msra.mxu0 0.0
    %674 = vmatprep.subr.mxu0 0.0
    %675 = vmatpush1.msra.mxu0 0.0
    %676 = vmatprep.subr.mxu0 0.0
    %677 = vmatpush1.msra.mxu0 0.0
    %678 = vmatprep.subr.mxu0 0.0
    %679 = vmatpush1.msra.mxu0 0.0
    %680 = vmatprep.subr.mxu0 0.0
    %681 = vmatpush1.msra.mxu0 0.0
    %682 = vmatprep.subr.mxu0 0.0
    %683 = vmatpush1.msra.mxu0 0.0
    %684 = vmatprep.subr.mxu0 0.0
    %685 = vmatpush1.msra.mxu0 0.0
    %686 = vmatprep.subr.mxu0 0.0
    %687 = vmatpush1.msra.mxu0 0.0
    %688 = vmatprep.subr.mxu0 0.0
    %689 = vmatpush1.msra.mxu0 0.0
    %690 = vmatprep.mubr.f32.mxu0 0.0
    %v691 = vand.u32 %v616, 4294901760
    %v692 = vsub.f32 %v616, %v691
    %v693 = vand.u32 %v692, 4294901760
    %v694 = vsub.f32 %v692, %v693
    %v695 = vand.u32 %v694, 4294901760
    %696 = vmatmul.mubr.f32.gmra.mrb[0].mxu0 %v695
    %v697 = vpop.f32.mrb[0].mxu0
    %v698 = vadd.f32 0.0, %v697
    %v699 = vpop.f32.mrb[0].mxu0
    %v700 = vadd.f32 0.0, %v699
    %701 = vdwg.mxu0
    %v702 = vsub.f32 %v104, %v104
    %v703 = vand.u32 %v702, 4294901760
    %v704 = vsub.f32 %v702, %v703
    %v705 = vand.u32 %v704, 4294901760
    %706 = vmatprep.subr.mxu0 %v705
    %v707 = vsub.f32 %v103, %v103
    %v708 = vand.u32 %v707, 4294901760
    %v709 = vsub.f32 %v707, %v708
    %v710 = vand.u32 %v709, 4294901760
    %711 = vmatpush1.msra.mxu0 %v710
    %v712 = vsub.f32 %v106, %v106
    %v713 = vand.u32 %v712, 4294901760
    %v714 = vsub.f32 %v712, %v713
    %v715 = vand.u32 %v714, 4294901760
    %716 = vmatprep.subr.mxu0 %v715
    %v717 = vsub.f32 %v105, %v105
    %v718 = vand.u32 %v717, 4294901760
    %v719 = vsub.f32 %v717, %v718
    %v720 = vand.u32 %v719, 4294901760
    %721 = vmatpush1.msra.mxu0 %v720
    %v722 = vand.u32 %v622, 4294901760
    %v723 = vsub.f32 %v622, %v722
    %v724 = vand.u32 %v723, 4294901760
    %v725 = vsub.f32 %v723, %v724
    %v726 = vand.u32 %v725, 4294901760
    %727 = vmatprep.subr.mxu0 %v726
    %v728 = vand.u32 %v619, 4294901760
    %v729 = vsub.f32 %v619, %v728
    %v730 = vand.u32 %v729, 4294901760
    %v731 = vsub.f32 %v729, %v730
    %v732 = vand.u32 %v731, 4294901760
    %733 = vmatpush1.msra.mxu0 %v732
    %734 = vmatprep.subr.mxu0 0.0
    %735 = vmatpush1.msra.mxu0 0.0
    %736 = vmatprep.subr.mxu0 0.0
    %737 = vmatpush1.msra.mxu0 0.0
    %738 = vmatprep.subr.mxu0 0.0
    %739 = vmatpush1.msra.mxu0 0.0
    %740 = vmatprep.subr.mxu0 0.0
    %741 = vmatpush1.msra.mxu0 0.0
    %742 = vmatprep.subr.mxu0 0.0
    %743 = vmatpush1.msra.mxu0 0.0
    %744 = vmatprep.subr.mxu0 0.0
    %745 = vmatpush1.msra.mxu0 0.0
    %746 = vmatprep.subr.mxu0 0.0
    %747 = vmatpush1.msra.mxu0 0.0
    %748 = vmatprep.subr.mxu0 0.0
    %749 = vmatpush1.msra.mxu0 0.0
    %750 = vmatprep.subr.mxu0 0.0
    %751 = vmatpush1.msra.mxu0 0.0
    %752 = vmatprep.subr.mxu0 0.0
    %753 = vmatpush1.msra.mxu0 0.0
    %754 = vmatprep.subr.mxu0 0.0
    %755 = vmatpush1.msra.mxu0 0.0
    %756 = vmatprep.subr.mxu0 0.0
    %757 = vmatpush1.msra.mxu0 0.0
    %758 = vmatprep.subr.mxu0 0.0
    %759 = vmatpush1.msra.mxu0 0.0
    %760 = vmatprep.subr.mxu0 0.0
    %761 = vmatpush1.msra.mxu0 0.0
    %762 = vmatprep.subr.mxu0 0.0
    %763 = vmatpush1.msra.mxu0 0.0
    %764 = vmatprep.subr.mxu0 0.0
    %765 = vmatpush1.msra.mxu0 0.0
    %766 = vmatprep.subr.mxu0 0.0
    %767 = vmatpush1.msra.mxu0 0.0
    %768 = vmatprep.subr.mxu0 0.0
    %769 = vmatpush1.msra.mxu0 0.0
    %770 = vmatprep.subr.mxu0 0.0
    %771 = vmatpush1.msra.mxu0 0.0
    %772 = vmatprep.subr.mxu0 0.0
    %773 = vmatpush1.msra.mxu0 0.0
    %774 = vmatprep.subr.mxu0 0.0
    %775 = vmatpush1.msra.mxu0 0.0
    %776 = vmatprep.subr.mxu0 0.0
    %777 = vmatpush1.msra.mxu0 0.0
    %778 = vmatprep.subr.mxu0 0.0
    %779 = vmatpush1.msra.mxu0 0.0
    %780 = vmatprep.subr.mxu0 0.0
    %781 = vmatpush1.msra.mxu0 0.0
    %782 = vmatprep.subr.mxu0 0.0
    %783 = vmatpush1.msra.mxu0 0.0
    %784 = vmatprep.subr.mxu0 0.0
    %785 = vmatpush1.msra.mxu0 0.0
    %786 = vmatprep.subr.mxu0 0.0
    %787 = vmatpush1.msra.mxu0 0.0
    %788 = vmatprep.subr.mxu0 0.0
    %789 = vmatpush1.msra.mxu0 0.0
    %790 = vmatprep.subr.mxu0 0.0
    %791 = vmatpush1.msra.mxu0 0.0
    %792 = vmatprep.mubr.f32.mxu0 0.0
    %v793 = vand.u32 %v616, 4294901760
    %794 = vmatmul.mubr.f32.gmra.mrb[0].mxu0 %v793
    %v795 = vpop.f32.mrb[0].mxu0
    %v796 = vadd.f32 %v698, %v795
    %v797 = vpop.f32.mrb[0].mxu0
    %v798 = vadd.f32 %v700, %v797
    %799 = vdwg.mxu0
    %v800 = vsub.f32 %v104, %v104
    %801 = vmatprep.subr.mxu0 %v800
    %v802 = vsub.f32 %v103, %v103
    %803 = vmatpush1.msra.mxu0 %v802
    %v804 = vsub.f32 %v106, %v106
    %805 = vmatprep.subr.mxu0 %v804
    %v806 = vsub.f32 %v105, %v105
    %807 = vmatpush1.msra.mxu0 %v806
    %v808 = vand.u32 %v622, 4294901760
    %v809 = vsub.f32 %v622, %v808
    %810 = vmatprep.subr.mxu0 %v809
    %v811 = vand.u32 %v619, 4294901760
    %v812 = vsub.f32 %v619, %v811
    %813 = vmatpush1.msra.mxu0 %v812
    %814 = vmatprep.subr.mxu0 0.0
    %815 = vmatpush1.msra.mxu0 0.0
    %816 = vmatprep.subr.mxu0 0.0
    %817 = vmatpush1.msra.mxu0 0.0
    %818 = vmatprep.subr.mxu0 0.0
    %819 = vmatpush1.msra.mxu0 0.0
    %820 = vmatprep.subr.mxu0 0.0
    %821 = vmatpush1.msra.mxu0 0.0
    %822 = vmatprep.subr.mxu0 0.0
    %823 = vmatpush1.msra.mxu0 0.0
    %824 = vmatprep.subr.mxu0 0.0
    %825 = vmatpush1.msra.mxu0 0.0
    %826 = vmatprep.subr.mxu0 0.0
    %827 = vmatpush1.msra.mxu0 0.0
    %828 = vmatprep.subr.mxu0 0.0
    %829 = vmatpush1.msra.mxu0 0.0
    %830 = vmatprep.subr.mxu0 0.0
    %831 = vmatpush1.msra.mxu0 0.0
    %832 = vmatprep.subr.mxu0 0.0
    %833 = vmatpush1.msra.mxu0 0.0
    %834 = vmatprep.subr.mxu0 0.0
    %835 = vmatpush1.msra.mxu0 0.0
    %836 = vmatprep.subr.mxu0 0.0
    %837 = vmatpush1.msra.mxu0 0.0
    %838 = vmatprep.subr.mxu0 0.0
    %839 = vmatpush1.msra.mxu0 0.0
    %840 = vmatprep.subr.mxu0 0.0
    %841 = vmatpush1.msra.mxu0 0.0
    %842 = vmatprep.subr.mxu0 0.0
    %843 = vmatpush1.msra.mxu0 0.0
    %844 = vmatprep.subr.mxu0 0.0
    %845 = vmatpush1.msra.mxu0 0.0
    %846 = vmatprep.subr.mxu0 0.0
    %847 = vmatpush1.msra.mxu0 0.0
    %848 = vmatprep.subr.mxu0 0.0
    %849 = vmatpush1.msra.mxu0 0.0
    %850 = vmatprep.subr.mxu0 0.0
    %851 = vmatpush1.msra.mxu0 0.0
    %852 = vmatprep.subr.mxu0 0.0
    %853 = vmatpush1.msra.mxu0 0.0
    %854 = vmatprep.subr.mxu0 0.0
    %855 = vmatpush1.msra.mxu0 0.0
    %856 = vmatprep.subr.mxu0 0.0
    %857 = vmatpush1.msra.mxu0 0.0
    %858 = vmatprep.subr.mxu0 0.0
    %859 = vmatpush1.msra.mxu0 0.0
    %860 = vmatprep.subr.mxu0 0.0
    %861 = vmatpush1.msra.mxu0 0.0
    %862 = vmatprep.subr.mxu0 0.0
    %863 = vmatpush1.msra.mxu0 0.0
    %864 = vmatprep.subr.mxu0 0.0
    %865 = vmatpush1.msra.mxu0 0.0
    %866 = vmatprep.subr.mxu0 0.0
    %867 = vmatpush1.msra.mxu0 0.0
    %868 = vmatprep.subr.mxu0 0.0
    %869 = vmatpush1.msra.mxu0 0.0
    %870 = vmatprep.subr.mxu0 0.0
    %871 = vmatpush1.msra.mxu0 0.0
    %872 = vmatprep.mubr.f32.mxu0 0.0
    %v873 = vand.u32 %v616, 4294901760
    %v874 = vsub.f32 %v616, %v873
    %875 = vmatmul.mubr.f32.gmra.mrb[0].mxu0 %v874
    %v876 = vpop.f32.mrb[0].mxu0
    %v877 = vadd.f32 %v796, %v876
    %v878 = vpop.f32.mrb[0].mxu0
    %v879 = vadd.f32 %v798, %v878
    %880 = vdwg.mxu0
    %881 = vmatprep.subr.mxu0 %v104
    %882 = vmatpush1.msra.mxu0 %v103
    %883 = vmatprep.subr.mxu0 %v106
    %884 = vmatpush1.msra.mxu0 %v105
    %v885 = vand.u32 %v622, 4294901760
    %886 = vmatprep.subr.mxu0 %v885
    %v887 = vand.u32 %v619, 4294901760
    %888 = vmatpush1.msra.mxu0 %v887
    %889 = vmatprep.subr.mxu0 0.0
    %890 = vmatpush1.msra.mxu0 0.0
    %891 = vmatprep.subr.mxu0 0.0
    %892 = vmatpush1.msra.mxu0 0.0
    %893 = vmatprep.subr.mxu0 0.0
    %894 = vmatpush1.msra.mxu0 0.0
    %895 = vmatprep.subr.mxu0 0.0
    %896 = vmatpush1.msra.mxu0 0.0
    %897 = vmatprep.subr.mxu0 0.0
    %898 = vmatpush1.msra.mxu0 0.0
    %899 = vmatprep.subr.mxu0 0.0
    %900 = vmatpush1.msra.mxu0 0.0
    %901 = vmatprep.subr.mxu0 0.0
    %902 = vmatpush1.msra.mxu0 0.0
    %903 = vmatprep.subr.mxu0 0.0
    %904 = vmatpush1.msra.mxu0 0.0
    %905 = vmatprep.subr.mxu0 0.0
    %906 = vmatpush1.msra.mxu0 0.0
    %907 = vmatprep.subr.mxu0 0.0
    %908 = vmatpush1.msra.mxu0 0.0
    %909 = vmatprep.subr.mxu0 0.0
    %910 = vmatpush1.msra.mxu0 0.0
    %911 = vmatprep.subr.mxu0 0.0
    %912 = vmatpush1.msra.mxu0 0.0
    %913 = vmatprep.subr.mxu0 0.0
    %914 = vmatpush1.msra.mxu0 0.0
    %915 = vmatprep.subr.mxu0 0.0
    %916 = vmatpush1.msra.mxu0 0.0
    %917 = vmatprep.subr.mxu0 0.0
    %918 = vmatpush1.msra.mxu0 0.0
    %919 = vmatprep.subr.mxu0 0.0
    %920 = vmatpush1.msra.mxu0 0.0
    %921 = vmatprep.subr.mxu0 0.0
    %922 = vmatpush1.msra.mxu0 0.0
    %923 = vmatprep.subr.mxu0 0.0
    %924 = vmatpush1.msra.mxu0 0.0
    %925 = vmatprep.subr.mxu0 0.0
    %926 = vmatpush1.msra.mxu0 0.0
    %927 = vmatprep.subr.mxu0 0.0
    %928 = vmatpush1.msra.mxu0 0.0
    %929 = vmatprep.subr.mxu0 0.0
    %930 = vmatpush1.msra.mxu0 0.0
    %931 = vmatprep.subr.mxu0 0.0
    %932 = vmatpush1.msra.mxu0 0.0
    %933 = vmatprep.subr.mxu0 0.0
    %934 = vmatpush1.msra.mxu0 0.0
    %935 = vmatprep.subr.mxu0 0.0
    %936 = vmatpush1.msra.mxu0 0.0
    %937 = vmatprep.subr.mxu0 0.0
    %938 = vmatpush1.msra.mxu0 0.0
    %939 = vmatprep.subr.mxu0 0.0
    %940 = vmatpush1.msra.mxu0 0.0
    %941 = vmatprep.subr.mxu0 0.0
    %942 = vmatpush1.msra.mxu0 0.0
    %943 = vmatprep.subr.mxu0 0.0
    %944 = vmatpush1.msra.mxu0 0.0
    %945 = vmatprep.subr.mxu0 0.0
    %946 = vmatpush1.msra.mxu0 0.0
    %947 = vmatprep.mubr.f32.mxu0 0.0
    %v948 = vand.u32 %v616, 4294901760
    %v949 = vsub.f32 %v616, %v948
    %v950 = vand.u32 %v949, 4294901760
    %951 = vmatmul.mubr.f32.gmra.mrb[0].mxu0 %v950
    %v952 = vpop.f32.mrb[0].mxu0
    %v953 = vadd.f32 %v877, %v952
    %v954 = vpop.f32.mrb[0].mxu0
    %v955 = vadd.f32 %v879, %v954
    %956 = vdwg.mxu0
    %v957 = vsub.f32 %v104, %v104
    %v958 = vand.u32 %v957, 4294901760
    %959 = vmatprep.subr.mxu0 %v958
    %v960 = vsub.f32 %v103, %v103
    %v961 = vand.u32 %v960, 4294901760
    %962 = vmatpush1.msra.mxu0 %v961
    %v963 = vsub.f32 %v106, %v106
    %v964 = vand.u32 %v963, 4294901760
    %965 = vmatprep.subr.mxu0 %v964
    %v966 = vsub.f32 %v105, %v105
    %v967 = vand.u32 %v966, 4294901760
    %968 = vmatpush1.msra.mxu0 %v967
    %v969 = vand.u32 %v622, 4294901760
    %v970 = vsub.f32 %v622, %v969
    %v971 = vand.u32 %v970, 4294901760
    %972 = vmatprep.subr.mxu0 %v971
    %v973 = vand.u32 %v619, 4294901760
    %v974 = vsub.f32 %v619, %v973
    %v975 = vand.u32 %v974, 4294901760
    %976 = vmatpush1.msra.mxu0 %v975
    %977 = vmatprep.subr.mxu0 0.0
    %978 = vmatpush1.msra.mxu0 0.0
    %979 = vmatprep.subr.mxu0 0.0
    %980 = vmatpush1.msra.mxu0 0.0
    %981 = vmatprep.subr.mxu0 0.0
    %982 = vmatpush1.msra.mxu0 0.0
    %983 = vmatprep.subr.mxu0 0.0
    %984 = vmatpush1.msra.mxu0 0.0
    %985 = vmatprep.subr.mxu0 0.0
    %986 = vmatpush1.msra.mxu0 0.0
    %987 = vmatprep.subr.mxu0 0.0
    %988 = vmatpush1.msra.mxu0 0.0
    %989 = vmatprep.subr.mxu0 0.0
    %990 = vmatpush1.msra.mxu0 0.0
    %991 = vmatprep.subr.mxu0 0.0
    %992 = vmatpush1.msra.mxu0 0.0
    %993 = vmatprep.subr.mxu0 0.0
    %994 = vmatpush1.msra.mxu0 0.0
    %995 = vmatprep.subr.mxu0 0.0
    %996 = vmatpush1.msra.mxu0 0.0
    %997 = vmatprep.subr.mxu0 0.0
    %998 = vmatpush1.msra.mxu0 0.0
    %999 = vmatprep.subr.mxu0 0.0
    %1000 = vmatpush1.msra.mxu0 0.0
    %1001 = vmatprep.subr.mxu0 0.0
    %1002 = vmatpush1.msra.mxu0 0.0
    %1003 = vmatprep.subr.mxu0 0.0
    %1004 = vmatpush1.msra.mxu0 0.0
    %1005 = vmatprep.subr.mxu0 0.0
    %1006 = vmatpush1.msra.mxu0 0.0
    %1007 = vmatprep.subr.mxu0 0.0
    %1008 = vmatpush1.msra.mxu0 0.0
    %1009 = vmatprep.subr.mxu0 0.0
    %1010 = vmatpush1.msra.mxu0 0.0
    %1011 = vmatprep.subr.mxu0 0.0
    %1012 = vmatpush1.msra.mxu0 0.0
    %1013 = vmatprep.subr.mxu0 0.0
    %1014 = vmatpush1.msra.mxu0 0.0
    %1015 = vmatprep.subr.mxu0 0.0
    %1016 = vmatpush1.msra.mxu0 0.0
    %1017 = vmatprep.subr.mxu0 0.0
    %1018 = vmatpush1.msra.mxu0 0.0
    %1019 = vmatprep.subr.mxu0 0.0
    %1020 = vmatpush1.msra.mxu0 0.0
    %1021 = vmatprep.subr.mxu0 0.0
    %1022 = vmatpush1.msra.mxu0 0.0
    %1023 = vmatprep.subr.mxu0 0.0
    %1024 = vmatpush1.msra.mxu0 0.0
    %1025 = vmatprep.subr.mxu0 0.0
    %1026 = vmatpush1.msra.mxu0 0.0
    %1027 = vmatprep.subr.mxu0 0.0
    %1028 = vmatpush1.msra.mxu0 0.0
    %1029 = vmatprep.subr.mxu0 0.0
    %1030 = vmatpush1.msra.mxu0 0.0
    %1031 = vmatprep.subr.mxu0 0.0
    %1032 = vmatpush1.msra.mxu0 0.0
    %1033 = vmatprep.subr.mxu0 0.0
    %1034 = vmatpush1.msra.mxu0 0.0
    %1035 = vmatprep.mubr.f32.mxu0 0.0
    %v1036 = vand.u32 %v616, 4294901760
    %1037 = vmatmul.mubr.f32.gmra.mrb[0].mxu0 %v1036
    %v1038 = vpop.f32.mrb[0].mxu0
    %v1039 = vadd.f32 %v953, %v1038
    %v1040 = vpop.f32.mrb[0].mxu0
    %v1041 = vadd.f32 %v955, %v1040
    %1042 = vdwg.mxu0
    %1043 = vmatprep.subr.mxu0 %v104
    %1044 = vmatpush1.msra.mxu0 %v103
    %1045 = vmatprep.subr.mxu0 %v106
    %1046 = vmatpush1.msra.mxu0 %v105
    %v1047 = vand.u32 %v622, 4294901760
    %1048 = vmatprep.subr.mxu0 %v1047
    %v1049 = vand.u32 %v619, 4294901760
    %1050 = vmatpush1.msra.mxu0 %v1049
    %1051 = vmatprep.subr.mxu0 0.0
    %1052 = vmatpush1.msra.mxu0 0.0
    %1053 = vmatprep.subr.mxu0 0.0
    %1054 = vmatpush1.msra.mxu0 0.0
    %1055 = vmatprep.subr.mxu0 0.0
    %1056 = vmatpush1.msra.mxu0 0.0
    %1057 = vmatprep.subr.mxu0 0.0
    %1058 = vmatpush1.msra.mxu0 0.0
    %1059 = vmatprep.subr.mxu0 0.0
    %1060 = vmatpush1.msra.mxu0 0.0
    %1061 = vmatprep.subr.mxu0 0.0
    %1062 = vmatpush1.msra.mxu0 0.0
    %1063 = vmatprep.subr.mxu0 0.0
    %1064 = vmatpush1.msra.mxu0 0.0
    %1065 = vmatprep.subr.mxu0 0.0
    %1066 = vmatpush1.msra.mxu0 0.0
    %1067 = vmatprep.subr.mxu0 0.0
    %1068 = vmatpush1.msra.mxu0 0.0
    %1069 = vmatprep.subr.mxu0 0.0
    %1070 = vmatpush1.msra.mxu0 0.0
    %1071 = vmatprep.subr.mxu0 0.0
    %1072 = vmatpush1.msra.mxu0 0.0
    %1073 = vmatprep.subr.mxu0 0.0
    %1074 = vmatpush1.msra.mxu0 0.0
    %1075 = vmatprep.subr.mxu0 0.0
    %1076 = vmatpush1.msra.mxu0 0.0
    %1077 = vmatprep.subr.mxu0 0.0
    %1078 = vmatpush1.msra.mxu0 0.0
    %1079 = vmatprep.subr.mxu0 0.0
    %1080 = vmatpush1.msra.mxu0 0.0
    %1081 = vmatprep.subr.mxu0 0.0
    %1082 = vmatpush1.msra.mxu0 0.0
    %1083 = vmatprep.subr.mxu0 0.0
    %1084 = vmatpush1.msra.mxu0 0.0
    %1085 = vmatprep.subr.mxu0 0.0
    %1086 = vmatpush1.msra.mxu0 0.0
    %1087 = vmatprep.subr.mxu0 0.0
    %1088 = vmatpush1.msra.mxu0 0.0
    %1089 = vmatprep.subr.mxu0 0.0
    %1090 = vmatpush1.msra.mxu0 0.0
    %1091 = vmatprep.subr.mxu0 0.0
    %1092 = vmatpush1.msra.mxu0 0.0
    %1093 = vmatprep.subr.mxu0 0.0
    %1094 = vmatpush1.msra.mxu0 0.0
    %1095 = vmatprep.subr.mxu0 0.0
    %1096 = vmatpush1.msra.mxu0 0.0
    %1097 = vmatprep.subr.mxu0 0.0
    %1098 = vmatpush1.msra.mxu0 0.0
    %1099 = vmatprep.subr.mxu0 0.0
    %1100 = vmatpush1.msra.mxu0 0.0
    %1101 = vmatprep.subr.mxu0 0.0
    %1102 = vmatpush1.msra.mxu0 0.0
    %1103 = vmatprep.subr.mxu0 0.0
    %1104 = vmatpush1.msra.mxu0 0.0
    %1105 = vmatprep.subr.mxu0 0.0
    %1106 = vmatpush1.msra.mxu0 0.0
    %1107 = vmatprep.subr.mxu0 0.0
    %1108 = vmatpush1.msra.mxu0 0.0
    %1109 = vmatprep.mubr.f32.mxu0 0.0
    %v1110 = vand.u32 %v616, 4294901760
    %1111 = vmatmul.mubr.f32.gmra.mrb[0].mxu0 %v1110
    %v1112 = vpop.f32.mrb[0].mxu0
    %v1113 = vadd.f32 %v1039, %v1112
    %v1114 = vpop.f32.mrb[0].mxu0
    %v1115 = vadd.f32 %v1041, %v1114
    %1116 = vdwg.mxu0
    %v1117 = vld [vmem:[#allocation11] sm:$0xff]
    %v1118 = vld [vmem:[#allocation11 + $0x8] sm:$0xff]
    %v1119 = vmul.f32 %v610, %v1113
    %v1120 = vmul.f32 %v612, %v1115
    %v1121 = vld [vmem:[#allocation10] sm:$0xff]
    %v1122 = vld [vmem:[#allocation10 + $0x8] sm:$0xff]
    %v1123 = vld [vmem:[#allocation10 + $0x10] sm:$0xff]
    %v1124 = vld [vmem:[#allocation10 + $0x18] sm:$0xff]
    %v1125 = vld [vmem:[#allocation10 + $0x20] sm:$0xff]
    %v1126 = vld [vmem:[#allocation10 + $0x28] sm:$0xff]
    %v1127 = vld [vmem:[#allocation10 + $0x30] sm:$0xff]
    %v1128 = vld [vmem:[#allocation10 + $0x38] sm:$0xff]
    %v1129 = vld [vmem:[#allocation10 + $0x40] sm:$0xff]
    %v1130 = vld [vmem:[#allocation10 + $0x48] sm:$0xff]
    %v1131 = vld [vmem:[#allocation10 + $0x50] sm:$0xff]
    %v1132 = vld [vmem:[#allocation10 + $0x58] sm:$0xff]
    %v1133 = vld [vmem:[#allocation10 + $0x60] sm:$0xff]
    %v1134 = vld [vmem:[#allocation10 + $0x68] sm:$0xff]
    %v1135 = vld [vmem:[#allocation10 + $0x70] sm:$0xff]
    %v1136 = vld [vmem:[#allocation10 + $0x78] sm:$0xff]
    %v1137 = vld [vmem:[#allocation10 + $0x80] sm:$0xff]
    %v1138 = vld [vmem:[#allocation10 + $0x88] sm:$0xff]
    %v1139 = vld [vmem:[#allocation10 + $0x90] sm:$0xff]
    %v1140 = vld [vmem:[#allocation10 + $0x98] sm:$0xff]
    %v1141 = vld [vmem:[#allocation10 + $0xa0] sm:$0xff]
    %v1142 = vld [vmem:[#allocation10 + $0xa8] sm:$0xff]
    %v1143 = vld [vmem:[#allocation10 + $0xb0] sm:$0xff]
    %v1144 = vld [vmem:[#allocation10 + $0xb8] sm:$0xff]
    %v1145 = vld [vmem:[#allocation10 + $0xc0] sm:$0xff]
    %v1146 = vld [vmem:[#allocation10 + $0xc8] sm:$0xff]
    %v1147 = vld [vmem:[#allocation10 + $0xd0] sm:$0xff]
    %v1148 = vld [vmem:[#allocation10 + $0xd8] sm:$0xff]
    %v1149 = vld [vmem:[#allocation10 + $0xe0] sm:$0xff]
    %v1150 = vld [vmem:[#allocation10 + $0xe8] sm:$0xff]
    %v1151 = vld [vmem:[#allocation10 + $0xf0] sm:$0xff]
    %v1152 = vld [vmem:[#allocation10 + $0xf8] sm:$0xff]
    %v1153 = vld [vmem:[#allocation10 + $0x100] sm:$0xff]
    %v1154 = vld [vmem:[#allocation10 + $0x108] sm:$0xff]
    %v1155 = vld [vmem:[#allocation10 + $0x110] sm:$0xff]
    %v1156 = vld [vmem:[#allocation10 + $0x118] sm:$0xff]
    %v1157 = vld [vmem:[#allocation10 + $0x120] sm:$0xff]
    %v1158 = vld [vmem:[#allocation10 + $0x128] sm:$0xff]
    %v1159 = vld [vmem:[#allocation10 + $0x130] sm:$0xff]
    %v1160 = vld [vmem:[#allocation10 + $0x138] sm:$0xff]
    %v1161 = vld [vmem:[#allocation10 + $0x140] sm:$0xff]
    %v1162 = vld [vmem:[#allocation10 + $0x148] sm:$0xff]
    %v1163 = vld [vmem:[#allocation10 + $0x150] sm:$0xff]
    %v1164 = vld [vmem:[#allocation10 + $0x158] sm:$0xff]
    %v1165 = vld [vmem:[#allocation10 + $0x160] sm:$0xff]
    %v1166 = vld [vmem:[#allocation10 + $0x168] sm:$0xff]
    %v1167 = vld [vmem:[#allocation10 + $0x170] sm:$0xff]
    %v1168 = vld [vmem:[#allocation10 + $0x178] sm:$0xff]
    %v1169 = vld [vmem:[#allocation10 + $0x180] sm:$0xff]
    %v1170 = vld [vmem:[#allocation10 + $0x188] sm:$0xff]
    %v1171 = vld [vmem:[#allocation10 + $0x190] sm:$0xff]
    %v1172 = vld [vmem:[#allocation10 + $0x198] sm:$0xff]
    %v1173 = vld [vmem:[#allocation10 + $0x1a0] sm:$0xff]
    %v1174 = vld [vmem:[#allocation10 + $0x1a8] sm:$0xff]
    %v1175 = vld [vmem:[#allocation10 + $0x1b0] sm:$0xff]
    %v1176 = vld [vmem:[#allocation10 + $0x1b8] sm:$0xff]
    %v1177 = vld [vmem:[#allocation10 + $0x1c0] sm:$0xff]
    %v1178 = vld [vmem:[#allocation10 + $0x1c8] sm:$0xff]
    %v1179 = vld [vmem:[#allocation10 + $0x1d0] sm:$0xff]
    %v1180 = vld [vmem:[#allocation10 + $0x1d8] sm:$0xff]
    %v1181 = vld [vmem:[#allocation10 + $0x1e0] sm:$0xff]
    %v1182 = vld [vmem:[#allocation10 + $0x1e8] sm:$0xff]
    %v1183 = vld [vmem:[#allocation10 + $0x1f0] sm:$0xff]
    %v1184 = vld [vmem:[#allocation10 + $0x1f8] sm:$0xff]
    %v1185 = vand.u32 %v1122, 4294901760
    %1186 = vmatprep.subr.mxu0 %v1185
    %v1187 = vand.u32 %v1121, 4294901760
    %1188 = vmatpush1.msra.mxu0 %v1187
    %v1189 = vand.u32 %v1124, 4294901760
    %1190 = vmatprep.subr.mxu0 %v1189
    %v1191 = vand.u32 %v1123, 4294901760
    %1192 = vmatpush1.msra.mxu0 %v1191
    %v1193 = vand.u32 %v1126, 4294901760
    %1194 = vmatprep.subr.mxu0 %v1193
    %v1195 = vand.u32 %v1125, 4294901760
    %1196 = vmatpush1.msra.mxu0 %v1195
    %v1197 = vand.u32 %v1128, 4294901760
    %1198 = vmatprep.subr.mxu0 %v1197
    %v1199 = vand.u32 %v1127, 4294901760
    %1200 = vmatpush1.msra.mxu0 %v1199
    %v1201 = vand.u32 %v1130, 4294901760
    %1202 = vmatprep.subr.mxu0 %v1201
    %v1203 = vand.u32 %v1129, 4294901760
    %1204 = vmatpush1.msra.mxu0 %v1203
    %v1205 = vand.u32 %v1132, 4294901760
    %1206 = vmatprep.subr.mxu0 %v1205
    %v1207 = vand.u32 %v1131, 4294901760
    %1208 = vmatpush1.msra.mxu0 %v1207
    %v1209 = vand.u32 %v1134, 4294901760
    %1210 = vmatprep.subr.mxu0 %v1209
    %v1211 = vand.u32 %v1133, 4294901760
    %1212 = vmatpush1.msra.mxu0 %v1211
    %v1213 = vand.u32 %v1136, 4294901760
    %1214 = vmatprep.subr.mxu0 %v1213
    %v1215 = vand.u32 %v1135, 4294901760
    %1216 = vmatpush1.msra.mxu0 %v1215
    %v1217 = vand.u32 %v1138, 4294901760
    %1218 = vmatprep.subr.mxu0 %v1217
    %v1219 = vand.u32 %v1137, 4294901760
    %1220 = vmatpush1.msra.mxu0 %v1219
    %v1221 = vand.u32 %v1140, 4294901760
    %1222 = vmatprep.subr.mxu0 %v1221
    %v1223 = vand.u32 %v1139, 4294901760
    %1224 = vmatpush1.msra.mxu0 %v1223
    %v1225 = vand.u32 %v1142, 4294901760
    %1226 = vmatprep.subr.mxu0 %v1225
    %v1227 = vand.u32 %v1141, 4294901760
    %1228 = vmatpush1.msra.mxu0 %v1227
    %v1229 = vand.u32 %v1144, 4294901760
    %1230 = vmatprep.subr.mxu0 %v1229
    %v1231 = vand.u32 %v1143, 4294901760
    %1232 = vmatpush1.msra.mxu0 %v1231
    %v1233 = vand.u32 %v1146, 4294901760
    %1234 = vmatprep.subr.mxu0 %v1233
    %v1235 = vand.u32 %v1145, 4294901760
    %1236 = vmatpush1.msra.mxu0 %v1235
    %v1237 = vand.u32 %v1148, 4294901760
    %1238 = vmatprep.subr.mxu0 %v1237
    %v1239 = vand.u32 %v1147, 4294901760
    %1240 = vmatpush1.msra.mxu0 %v1239
    %v1241 = vand.u32 %v1150, 4294901760
    %1242 = vmatprep.subr.mxu0 %v1241
    %v1243 = vand.u32 %v1149, 4294901760
    %1244 = vmatpush1.msra.mxu0 %v1243
    %v1245 = vand.u32 %v1152, 4294901760
    %1246 = vmatprep.subr.mxu0 %v1245
    %v1247 = vand.u32 %v1151, 4294901760
    %1248 = vmatpush1.msra.mxu0 %v1247
    %v1249 = vand.u32 %v1154, 4294901760
    %1250 = vmatprep.subr.mxu0 %v1249
    %v1251 = vand.u32 %v1153, 4294901760
    %1252 = vmatpush1.msra.mxu0 %v1251
    %v1253 = vand.u32 %v1156, 4294901760
    %1254 = vmatprep.subr.mxu0 %v1253
    %v1255 = vand.u32 %v1155, 4294901760
    %1256 = vmatpush1.msra.mxu0 %v1255
    %v1257 = vand.u32 %v1158, 4294901760
    %1258 = vmatprep.subr.mxu0 %v1257
    %v1259 = vand.u32 %v1157, 4294901760
    %1260 = vmatpush1.msra.mxu0 %v1259
    %v1261 = vand.u32 %v1160, 4294901760
    %1262 = vmatprep.subr.mxu0 %v1261
    %v1263 = vand.u32 %v1159, 4294901760
    %1264 = vmatpush1.msra.mxu0 %v1263
    %v1265 = vand.u32 %v1162, 4294901760
    %1266 = vmatprep.subr.mxu0 %v1265
    %v1267 = vand.u32 %v1161, 4294901760
    %1268 = vmatpush1.msra.mxu0 %v1267
    %v1269 = vand.u32 %v1164, 4294901760
    %1270 = vmatprep.subr.mxu0 %v1269
    %v1271 = vand.u32 %v1163, 4294901760
    %1272 = vmatpush1.msra.mxu0 %v1271
    %v1273 = vand.u32 %v1166, 4294901760
    %1274 = vmatprep.subr.mxu0 %v1273
    %v1275 = vand.u32 %v1165, 4294901760
    %1276 = vmatpush1.msra.mxu0 %v1275
    %v1277 = vand.u32 %v1168, 4294901760
    %1278 = vmatprep.subr.mxu0 %v1277
    %v1279 = vand.u32 %v1167, 4294901760
    %1280 = vmatpush1.msra.mxu0 %v1279
    %v1281 = vand.u32 %v1170, 4294901760
    %1282 = vmatprep.subr.mxu0 %v1281
    %v1283 = vand.u32 %v1169, 4294901760
    %1284 = vmatpush1.msra.mxu0 %v1283
    %v1285 = vand.u32 %v1172, 4294901760
    %1286 = vmatprep.subr.mxu0 %v1285
    %v1287 = vand.u32 %v1171, 4294901760
    %1288 = vmatpush1.msra.mxu0 %v1287
    %v1289 = vand.u32 %v1174, 4294901760
    %1290 = vmatprep.subr.mxu0 %v1289
    %v1291 = vand.u32 %v1173, 4294901760
    %1292 = vmatpush1.msra.mxu0 %v1291
    %v1293 = vand.u32 %v1176, 4294901760
    %1294 = vmatprep.subr.mxu0 %v1293
    %v1295 = vand.u32 %v1175, 4294901760
    %1296 = vmatpush1.msra.mxu0 %v1295
    %v1297 = vand.u32 %v1178, 4294901760
    %1298 = vmatprep.subr.mxu0 %v1297
    %v1299 = vand.u32 %v1177, 4294901760
    %1300 = vmatpush1.msra.mxu0 %v1299
    %v1301 = vand.u32 %v1180, 4294901760
    %1302 = vmatprep.subr.mxu0 %v1301
    %v1303 = vand.u32 %v1179, 4294901760
    %1304 = vmatpush1.msra.mxu0 %v1303
    %v1305 = vand.u32 %v1182, 4294901760
    %1306 = vmatprep.subr.mxu0 %v1305
    %v1307 = vand.u32 %v1181, 4294901760
    %1308 = vmatpush1.msra.mxu0 %v1307
    %v1309 = vand.u32 %v1184, 4294901760
    %1310 = vmatprep.subr.mxu0 %v1309
    %v1311 = vand.u32 %v1183, 4294901760
    %1312 = vmatpush1.msra.mxu0 %v1311
    %v1313 = vand.u32 %v1120, 4294901760
    %v1314 = vsub.f32 %v1120, %v1313
    %v1315 = vand.u32 %v1314, 4294901760
    %v1316 = vsub.f32 %v1314, %v1315
    %v1317 = vand.u32 %v1316, 4294901760
    %1318 = vmatprep.mubr.f32.mxu0 %v1317
    %v1319 = vand.u32 %v1119, 4294901760
    %v1320 = vsub.f32 %v1119, %v1319
    %v1321 = vand.u32 %v1320, 4294901760
    %v1322 = vsub.f32 %v1320, %v1321
    %v1323 = vand.u32 %v1322, 4294901760
    %1324 = vmatmul.mubr.f32.gmra.mrb[0].mxu0 %v1323
    %v1325 = vpop.f32.mrb[0].mxu0
    %v1326 = vadd.f32 0.0, %v1325
    %v1327 = vpop.f32.mrb[0].mxu0
    %v1328 = vadd.f32 0.0, %v1327
    %1329 = vdwg.mxu0
    %v1330 = vand.u32 %v1122, 4294901760
    %v1331 = vsub.f32 %v1122, %v1330
    %v1332 = vand.u32 %v1331, 4294901760
    %v1333 = vsub.f32 %v1331, %v1332
    %v1334 = vand.u32 %v1333, 4294901760
    %1335 = vmatprep.subr.mxu0 %v1334
    %v1336 = vand.u32 %v1121, 4294901760
    %v1337 = vsub.f32 %v1121, %v1336
    %v1338 = vand.u32 %v1337, 4294901760
    %v1339 = vsub.f32 %v1337, %v1338
    %v1340 = vand.u32 %v1339, 4294901760
    %1341 = vmatpush1.msra.mxu0 %v1340
    %v1342 = vand.u32 %v1124, 4294901760
    %v1343 = vsub.f32 %v1124, %v1342
    %v1344 = vand.u32 %v1343, 4294901760
    %v1345 = vsub.f32 %v1343, %v1344
    %v1346 = vand.u32 %v1345, 4294901760
    %1347 = vmatprep.subr.mxu0 %v1346
    %v1348 = vand.u32 %v1123, 4294901760
    %v1349 = vsub.f32 %v1123, %v1348
    %v1350 = vand.u32 %v1349, 4294901760
    %v1351 = vsub.f32 %v1349, %v1350
    %v1352 = vand.u32 %v1351, 4294901760
    %1353 = vmatpush1.msra.mxu0 %v1352
    %v1354 = vand.u32 %v1126, 4294901760
    %v1355 = vsub.f32 %v1126, %v1354
    %v1356 = vand.u32 %v1355, 4294901760
    %v1357 = vsub.f32 %v1355, %v1356
    %v1358 = vand.u32 %v1357, 4294901760
    %1359 = vmatprep.subr.mxu0 %v1358
    %v1360 = vand.u32 %v1125, 4294901760
    %v1361 = vsub.f32 %v1125, %v1360
    %v1362 = vand.u32 %v1361, 4294901760
    %v1363 = vsub.f32 %v1361, %v1362
    %v1364 = vand.u32 %v1363, 4294901760
    %1365 = vmatpush1.msra.mxu0 %v1364
    %v1366 = vand.u32 %v1128, 4294901760
    %v1367 = vsub.f32 %v1128, %v1366
    %v1368 = vand.u32 %v1367, 4294901760
    %v1369 = vsub.f32 %v1367, %v1368
    %v1370 = vand.u32 %v1369, 4294901760
    %1371 = vmatprep.subr.mxu0 %v1370
    %v1372 = vand.u32 %v1127, 4294901760
    %v1373 = vsub.f32 %v1127, %v1372
    %v1374 = vand.u32 %v1373, 4294901760
    %v1375 = vsub.f32 %v1373, %v1374
    %v1376 = vand.u32 %v1375, 4294901760
    %1377 = vmatpush1.msra.mxu0 %v1376
    %v1378 = vand.u32 %v1130, 4294901760
    %v1379 = vsub.f32 %v1130, %v1378
    %v1380 = vand.u32 %v1379, 4294901760
    %v1381 = vsub.f32 %v1379, %v1380
    %v1382 = vand.u32 %v1381, 4294901760
    %1383 = vmatprep.subr.mxu0 %v1382
    %v1384 = vand.u32 %v1129, 4294901760
    %v1385 = vsub.f32 %v1129, %v1384
    %v1386 = vand.u32 %v1385, 4294901760
    %v1387 = vsub.f32 %v1385, %v1386
    %v1388 = vand.u32 %v1387, 4294901760
    %1389 = vmatpush1.msra.mxu0 %v1388
    %v1390 = vand.u32 %v1132, 4294901760
    %v1391 = vsub.f32 %v1132, %v1390
    %v1392 = vand.u32 %v1391, 4294901760
    %v1393 = vsub.f32 %v1391, %v1392
    %v1394 = vand.u32 %v1393, 4294901760
    %1395 = vmatprep.subr.mxu0 %v1394
    %v1396 = vand.u32 %v1131, 4294901760
    %v1397 = vsub.f32 %v1131, %v1396
    %v1398 = vand.u32 %v1397, 4294901760
    %v1399 = vsub.f32 %v1397, %v1398
    %v1400 = vand.u32 %v1399, 4294901760
    %1401 = vmatpush1.msra.mxu0 %v1400
    %v1402 = vand.u32 %v1134, 4294901760
    %v1403 = vsub.f32 %v1134, %v1402
    %v1404 = vand.u32 %v1403, 4294901760
    %v1405 = vsub.f32 %v1403, %v1404
    %v1406 = vand.u32 %v1405, 4294901760
    %1407 = vmatprep.subr.mxu0 %v1406
    %v1408 = vand.u32 %v1133, 4294901760
    %v1409 = vsub.f32 %v1133, %v1408
    %v1410 = vand.u32 %v1409, 4294901760
    %v1411 = vsub.f32 %v1409, %v1410
    %v1412 = vand.u32 %v1411, 4294901760
    %1413 = vmatpush1.msra.mxu0 %v1412
    %v1414 = vand.u32 %v1136, 4294901760
    %v1415 = vsub.f32 %v1136, %v1414
    %v1416 = vand.u32 %v1415, 4294901760
    %v1417 = vsub.f32 %v1415, %v1416
    %v1418 = vand.u32 %v1417, 4294901760
    %1419 = vmatprep.subr.mxu0 %v1418
    %v1420 = vand.u32 %v1135, 4294901760
    %v1421 = vsub.f32 %v1135, %v1420
    %v1422 = vand.u32 %v1421, 4294901760
    %v1423 = vsub.f32 %v1421, %v1422
    %v1424 = vand.u32 %v1423, 4294901760
    %1425 = vmatpush1.msra.mxu0 %v1424
    %v1426 = vand.u32 %v1138, 4294901760
    %v1427 = vsub.f32 %v1138, %v1426
    %v1428 = vand.u32 %v1427, 4294901760
    %v1429 = vsub.f32 %v1427, %v1428
    %v1430 = vand.u32 %v1429, 4294901760
    %1431 = vmatprep.subr.mxu0 %v1430
    %v1432 = vand.u32 %v1137, 4294901760
    %v1433 = vsub.f32 %v1137, %v1432
    %v1434 = vand.u32 %v1433, 4294901760
    %v1435 = vsub.f32 %v1433, %v1434
    %v1436 = vand.u32 %v1435, 4294901760
    %1437 = vmatpush1.msra.mxu0 %v1436
    %v1438 = vand.u32 %v1140, 4294901760
    %v1439 = vsub.f32 %v1140, %v1438
    %v1440 = vand.u32 %v1439, 4294901760
    %v1441 = vsub.f32 %v1439, %v1440
    %v1442 = vand.u32 %v1441, 4294901760
    %1443 = vmatprep.subr.mxu0 %v1442
    %v1444 = vand.u32 %v1139, 4294901760
    %v1445 = vsub.f32 %v1139, %v1444
    %v1446 = vand.u32 %v1445, 4294901760
    %v1447 = vsub.f32 %v1445, %v1446
    %v1448 = vand.u32 %v1447, 4294901760
    %1449 = vmatpush1.msra.mxu0 %v1448
    %v1450 = vand.u32 %v1142, 4294901760
    %v1451 = vsub.f32 %v1142, %v1450
    %v1452 = vand.u32 %v1451, 4294901760
    %v1453 = vsub.f32 %v1451, %v1452
    %v1454 = vand.u32 %v1453, 4294901760
    %1455 = vmatprep.subr.mxu0 %v1454
    %v1456 = vand.u32 %v1141, 4294901760
    %v1457 = vsub.f32 %v1141, %v1456
    %v1458 = vand.u32 %v1457, 4294901760
    %v1459 = vsub.f32 %v1457, %v1458
    %v1460 = vand.u32 %v1459, 4294901760
    %1461 = vmatpush1.msra.mxu0 %v1460
    %v1462 = vand.u32 %v1144, 4294901760
    %v1463 = vsub.f32 %v1144, %v1462
    %v1464 = vand.u32 %v1463, 4294901760
    %v1465 = vsub.f32 %v1463, %v1464
    %v1466 = vand.u32 %v1465, 4294901760
    %1467 = vmatprep.subr.mxu0 %v1466
    %v1468 = vand.u32 %v1143, 4294901760
    %v1469 = vsub.f32 %v1143, %v1468
    %v1470 = vand.u32 %v1469, 4294901760
    %v1471 = vsub.f32 %v1469, %v1470
    %v1472 = vand.u32 %v1471, 4294901760
    %1473 = vmatpush1.msra.mxu0 %v1472
    %v1474 = vand.u32 %v1146, 4294901760
    %v1475 = vsub.f32 %v1146, %v1474
    %v1476 = vand.u32 %v1475, 4294901760
    %v1477 = vsub.f32 %v1475, %v1476
    %v1478 = vand.u32 %v1477, 4294901760
    %1479 = vmatprep.subr.mxu0 %v1478
    %v1480 = vand.u32 %v1145, 4294901760
    %v1481 = vsub.f32 %v1145, %v1480
    %v1482 = vand.u32 %v1481, 4294901760
    %v1483 = vsub.f32 %v1481, %v1482
    %v1484 = vand.u32 %v1483, 4294901760
    %1485 = vmatpush1.msra.mxu0 %v1484
    %v1486 = vand.u32 %v1148, 4294901760
    %v1487 = vsub.f32 %v1148, %v1486
    %v1488 = vand.u32 %v1487, 4294901760
    %v1489 = vsub.f32 %v1487, %v1488
    %v1490 = vand.u32 %v1489, 4294901760
    %1491 = vmatprep.subr.mxu0 %v1490
    %v1492 = vand.u32 %v1147, 4294901760
    %v1493 = vsub.f32 %v1147, %v1492
    %v1494 = vand.u32 %v1493, 4294901760
    %v1495 = vsub.f32 %v1493, %v1494
    %v1496 = vand.u32 %v1495, 4294901760
    %1497 = vmatpush1.msra.mxu0 %v1496
    %v1498 = vand.u32 %v1150, 4294901760
    %v1499 = vsub.f32 %v1150, %v1498
    %v1500 = vand.u32 %v1499, 4294901760
    %v1501 = vsub.f32 %v1499, %v1500
    %v1502 = vand.u32 %v1501, 4294901760
    %1503 = vmatprep.subr.mxu0 %v1502
    %v1504 = vand.u32 %v1149, 4294901760
    %v1505 = vsub.f32 %v1149, %v1504
    %v1506 = vand.u32 %v1505, 4294901760
    %v1507 = vsub.f32 %v1505, %v1506
    %v1508 = vand.u32 %v1507, 4294901760
    %1509 = vmatpush1.msra.mxu0 %v1508
    %v1510 = vand.u32 %v1152, 4294901760
    %v1511 = vsub.f32 %v1152, %v1510
    %v1512 = vand.u32 %v1511, 4294901760
    %v1513 = vsub.f32 %v1511, %v1512
    %v1514 = vand.u32 %v1513, 4294901760
    %1515 = vmatprep.subr.mxu0 %v1514
    %v1516 = vand.u32 %v1151, 4294901760
    %v1517 = vsub.f32 %v1151, %v1516
    %v1518 = vand.u32 %v1517, 4294901760
    %v1519 = vsub.f32 %v1517, %v1518
    %v1520 = vand.u32 %v1519, 4294901760
    %1521 = vmatpush1.msra.mxu0 %v1520
    %v1522 = vand.u32 %v1154, 4294901760
    %v1523 = vsub.f32 %v1154, %v1522
    %v1524 = vand.u32 %v1523, 4294901760
    %v1525 = vsub.f32 %v1523, %v1524
    %v1526 = vand.u32 %v1525, 4294901760
    %1527 = vmatprep.subr.mxu0 %v1526
    %v1528 = vand.u32 %v1153, 4294901760
    %v1529 = vsub.f32 %v1153, %v1528
    %v1530 = vand.u32 %v1529, 4294901760
    %v1531 = vsub.f32 %v1529, %v1530
    %v1532 = vand.u32 %v1531, 4294901760
    %1533 = vmatpush1.msra.mxu0 %v1532
    %v1534 = vand.u32 %v1156, 4294901760
    %v1535 = vsub.f32 %v1156, %v1534
    %v1536 = vand.u32 %v1535, 4294901760
    %v1537 = vsub.f32 %v1535, %v1536
    %v1538 = vand.u32 %v1537, 4294901760
    %1539 = vmatprep.subr.mxu0 %v1538
    %v1540 = vand.u32 %v1155, 4294901760
    %v1541 = vsub.f32 %v1155, %v1540
    %v1542 = vand.u32 %v1541, 4294901760
    %v1543 = vsub.f32 %v1541, %v1542
    %v1544 = vand.u32 %v1543, 4294901760
    %1545 = vmatpush1.msra.mxu0 %v1544
    %v1546 = vand.u32 %v1158, 4294901760
    %v1547 = vsub.f32 %v1158, %v1546
    %v1548 = vand.u32 %v1547, 4294901760
    %v1549 = vsub.f32 %v1547, %v1548
    %v1550 = vand.u32 %v1549, 4294901760
    %1551 = vmatprep.subr.mxu0 %v1550
    %v1552 = vand.u32 %v1157, 4294901760
    %v1553 = vsub.f32 %v1157, %v1552
    %v1554 = vand.u32 %v1553, 4294901760
    %v1555 = vsub.f32 %v1553, %v1554
    %v1556 = vand.u32 %v1555, 4294901760
    %1557 = vmatpush1.msra.mxu0 %v1556
    %v1558 = vand.u32 %v1160, 4294901760
    %v1559 = vsub.f32 %v1160, %v1558
    %v1560 = vand.u32 %v1559, 4294901760
    %v1561 = vsub.f32 %v1559, %v1560
    %v1562 = vand.u32 %v1561, 4294901760
    %1563 = vmatprep.subr.mxu0 %v1562
    %v1564 = vand.u32 %v1159, 4294901760
    %v1565 = vsub.f32 %v1159, %v1564
    %v1566 = vand.u32 %v1565, 4294901760
    %v1567 = vsub.f32 %v1565, %v1566
    %v1568 = vand.u32 %v1567, 4294901760
    %1569 = vmatpush1.msra.mxu0 %v1568
    %v1570 = vand.u32 %v1162, 4294901760
    %v1571 = vsub.f32 %v1162, %v1570
    %v1572 = vand.u32 %v1571, 4294901760
    %v1573 = vsub.f32 %v1571, %v1572
    %v1574 = vand.u32 %v1573, 4294901760
    %1575 = vmatprep.subr.mxu0 %v1574
    %v1576 = vand.u32 %v1161, 4294901760
    %v1577 = vsub.f32 %v1161, %v1576
    %v1578 = vand.u32 %v1577, 4294901760
    %v1579 = vsub.f32 %v1577, %v1578
    %v1580 = vand.u32 %v1579, 4294901760
    %1581 = vmatpush1.msra.mxu0 %v1580
    %v1582 = vand.u32 %v1164, 4294901760
    %v1583 = vsub.f32 %v1164, %v1582
    %v1584 = vand.u32 %v1583, 4294901760
    %v1585 = vsub.f32 %v1583, %v1584
    %v1586 = vand.u32 %v1585, 4294901760
    %1587 = vmatprep.subr.mxu0 %v1586
    %v1588 = vand.u32 %v1163, 4294901760
    %v1589 = vsub.f32 %v1163, %v1588
    %v1590 = vand.u32 %v1589, 4294901760
    %v1591 = vsub.f32 %v1589, %v1590
    %v1592 = vand.u32 %v1591, 4294901760
    %1593 = vmatpush1.msra.mxu0 %v1592
    %v1594 = vand.u32 %v1166, 4294901760
    %v1595 = vsub.f32 %v1166, %v1594
    %v1596 = vand.u32 %v1595, 4294901760
    %v1597 = vsub.f32 %v1595, %v1596
    %v1598 = vand.u32 %v1597, 4294901760
    %1599 = vmatprep.subr.mxu0 %v1598
    %v1600 = vand.u32 %v1165, 4294901760
    %v1601 = vsub.f32 %v1165, %v1600
    %v1602 = vand.u32 %v1601, 4294901760
    %v1603 = vsub.f32 %v1601, %v1602
    %v1604 = vand.u32 %v1603, 4294901760
    %1605 = vmatpush1.msra.mxu0 %v1604
    %v1606 = vand.u32 %v1168, 4294901760
    %v1607 = vsub.f32 %v1168, %v1606
    %v1608 = vand.u32 %v1607, 4294901760
    %v1609 = vsub.f32 %v1607, %v1608
    %v1610 = vand.u32 %v1609, 4294901760
    %1611 = vmatprep.subr.mxu0 %v1610
    %v1612 = vand.u32 %v1167, 4294901760
    %v1613 = vsub.f32 %v1167, %v1612
    %v1614 = vand.u32 %v1613, 4294901760
    %v1615 = vsub.f32 %v1613, %v1614
    %v1616 = vand.u32 %v1615, 4294901760
    %1617 = vmatpush1.msra.mxu0 %v1616
    %v1618 = vand.u32 %v1170, 4294901760
    %v1619 = vsub.f32 %v1170, %v1618
    %v1620 = vand.u32 %v1619, 4294901760
    %v1621 = vsub.f32 %v1619, %v1620
    %v1622 = vand.u32 %v1621, 4294901760
    %1623 = vmatprep.subr.mxu0 %v1622
    %v1624 = vand.u32 %v1169, 4294901760
    %v1625 = vsub.f32 %v1169, %v1624
    %v1626 = vand.u32 %v1625, 4294901760
    %v1627 = vsub.f32 %v1625, %v1626
    %v1628 = vand.u32 %v1627, 4294901760
    %1629 = vmatpush1.msra.mxu0 %v1628
    %v1630 = vand.u32 %v1172, 4294901760
    %v1631 = vsub.f32 %v1172, %v1630
    %v1632 = vand.u32 %v1631, 4294901760
    %v1633 = vsub.f32 %v1631, %v1632
    %v1634 = vand.u32 %v1633, 4294901760
    %1635 = vmatprep.subr.mxu0 %v1634
    %v1636 = vand.u32 %v1171, 4294901760
    %v1637 = vsub.f32 %v1171, %v1636
    %v1638 = vand.u32 %v1637, 4294901760
    %v1639 = vsub.f32 %v1637, %v1638
    %v1640 = vand.u32 %v1639, 4294901760
    %1641 = vmatpush1.msra.mxu0 %v1640
    %v1642 = vand.u32 %v1174, 4294901760
    %v1643 = vsub.f32 %v1174, %v1642
    %v1644 = vand.u32 %v1643, 4294901760
    %v1645 = vsub.f32 %v1643, %v1644
    %v1646 = vand.u32 %v1645, 4294901760
    %1647 = vmatprep.subr.mxu0 %v1646
    %v1648 = vand.u32 %v1173, 4294901760
    %v1649 = vsub.f32 %v1173, %v1648
    %v1650 = vand.u32 %v1649, 4294901760
    %v1651 = vsub.f32 %v1649, %v1650
    %v1652 = vand.u32 %v1651, 4294901760
    %1653 = vmatpush1.msra.mxu0 %v1652
    %v1654 = vand.u32 %v1176, 4294901760
    %v1655 = vsub.f32 %v1176, %v1654
    %v1656 = vand.u32 %v1655, 4294901760
    %v1657 = vsub.f32 %v1655, %v1656
    %v1658 = vand.u32 %v1657, 4294901760
    %1659 = vmatprep.subr.mxu0 %v1658
    %v1660 = vand.u32 %v1175, 4294901760
    %v1661 = vsub.f32 %v1175, %v1660
    %v1662 = vand.u32 %v1661, 4294901760
    %v1663 = vsub.f32 %v1661, %v1662
    %v1664 = vand.u32 %v1663, 4294901760
    %1665 = vmatpush1.msra.mxu0 %v1664
    %v1666 = vand.u32 %v1178, 4294901760
    %v1667 = vsub.f32 %v1178, %v1666
    %v1668 = vand.u32 %v1667, 4294901760
    %v1669 = vsub.f32 %v1667, %v1668
    %v1670 = vand.u32 %v1669, 4294901760
    %1671 = vmatprep.subr.mxu0 %v1670
    %v1672 = vand.u32 %v1177, 4294901760
    %v1673 = vsub.f32 %v1177, %v1672
    %v1674 = vand.u32 %v1673, 4294901760
    %v1675 = vsub.f32 %v1673, %v1674
    %v1676 = vand.u32 %v1675, 4294901760
    %1677 = vmatpush1.msra.mxu0 %v1676
    %v1678 = vand.u32 %v1180, 4294901760
    %v1679 = vsub.f32 %v1180, %v1678
    %v1680 = vand.u32 %v1679, 4294901760
    %v1681 = vsub.f32 %v1679, %v1680
    %v1682 = vand.u32 %v1681, 4294901760
    %1683 = vmatprep.subr.mxu0 %v1682
    %v1684 = vand.u32 %v1179, 4294901760
    %v1685 = vsub.f32 %v1179, %v1684
    %v1686 = vand.u32 %v1685, 4294901760
    %v1687 = vsub.f32 %v1685, %v1686
    %v1688 = vand.u32 %v1687, 4294901760
    %1689 = vmatpush1.msra.mxu0 %v1688
    %v1690 = vand.u32 %v1182, 4294901760
    %v1691 = vsub.f32 %v1182, %v1690
    %v1692 = vand.u32 %v1691, 4294901760
    %v1693 = vsub.f32 %v1691, %v1692
    %v1694 = vand.u32 %v1693, 4294901760
    %1695 = vmatprep.subr.mxu0 %v1694
    %v1696 = vand.u32 %v1181, 4294901760
    %v1697 = vsub.f32 %v1181, %v1696
    %v1698 = vand.u32 %v1697, 4294901760
    %v1699 = vsub.f32 %v1697, %v1698
    %v1700 = vand.u32 %v1699, 4294901760
    %1701 = vmatpush1.msra.mxu0 %v1700
    %v1702 = vand.u32 %v1184, 4294901760
    %v1703 = vsub.f32 %v1184, %v1702
    %v1704 = vand.u32 %v1703, 4294901760
    %v1705 = vsub.f32 %v1703, %v1704
    %v1706 = vand.u32 %v1705, 4294901760
    %1707 = vmatprep.subr.mxu0 %v1706
    %v1708 = vand.u32 %v1183, 4294901760
    %v1709 = vsub.f32 %v1183, %v1708
    %v1710 = vand.u32 %v1709, 4294901760
    %v1711 = vsub.f32 %v1709, %v1710
    %v1712 = vand.u32 %v1711, 4294901760
    %1713 = vmatpush1.msra.mxu0 %v1712
    %v1714 = vand.u32 %v1120, 4294901760
    %1715 = vmatprep.mubr.f32.mxu0 %v1714
    %v1716 = vand.u32 %v1119, 4294901760
    %1717 = vmatmul.mubr.f32.gmra.mrb[0].mxu0 %v1716
    %v1718 = vpop.f32.mrb[0].mxu0
    %v1719 = vadd.f32 %v1326, %v1718
    %v1720 = vpop.f32.mrb[0].mxu0
    %v1721 = vadd.f32 %v1328, %v1720
    %1722 = vdwg.mxu0
    %v1723 = vand.u32 %v1122, 4294901760
    %v1724 = vsub.f32 %v1122, %v1723
    %1725 = vmatprep.subr.mxu0 %v1724
    %v1726 = vand.u32 %v1121, 4294901760
    %v1727 = vsub.f32 %v1121, %v1726
    %1728 = vmatpush1.msra.mxu0 %v1727
    %v1729 = vand.u32 %v1124, 4294901760
    %v1730 = vsub.f32 %v1124, %v1729
    %1731 = vmatprep.subr.mxu0 %v1730
    %v1732 = vand.u32 %v1123, 4294901760
    %v1733 = vsub.f32 %v1123, %v1732
    %1734 = vmatpush1.msra.mxu0 %v1733
    %v1735 = vand.u32 %v1126, 4294901760
    %v1736 = vsub.f32 %v1126, %v1735
    %1737 = vmatprep.subr.mxu0 %v1736
    %v1738 = vand.u32 %v1125, 4294901760
    %v1739 = vsub.f32 %v1125, %v1738
    %1740 = vmatpush1.msra.mxu0 %v1739
    %v1741 = vand.u32 %v1128, 4294901760
    %v1742 = vsub.f32 %v1128, %v1741
    %1743 = vmatprep.subr.mxu0 %v1742
    %v1744 = vand.u32 %v1127, 4294901760
    %v1745 = vsub.f32 %v1127, %v1744
    %1746 = vmatpush1.msra.mxu0 %v1745
    %v1747 = vand.u32 %v1130, 4294901760
    %v1748 = vsub.f32 %v1130, %v1747
    %1749 = vmatprep.subr.mxu0 %v1748
    %v1750 = vand.u32 %v1129, 4294901760
    %v1751 = vsub.f32 %v1129, %v1750
    %1752 = vmatpush1.msra.mxu0 %v1751
    %v1753 = vand.u32 %v1132, 4294901760
    %v1754 = vsub.f32 %v1132, %v1753
    %1755 = vmatprep.subr.mxu0 %v1754
    %v1756 = vand.u32 %v1131, 4294901760
    %v1757 = vsub.f32 %v1131, %v1756
    %1758 = vmatpush1.msra.mxu0 %v1757
    %v1759 = vand.u32 %v1134, 4294901760
    %v1760 = vsub.f32 %v1134, %v1759
    %1761 = vmatprep.subr.mxu0 %v1760
    %v1762 = vand.u32 %v1133, 4294901760
    %v1763 = vsub.f32 %v1133, %v1762
    %1764 = vmatpush1.msra.mxu0 %v1763
    %v1765 = vand.u32 %v1136, 4294901760
    %v1766 = vsub.f32 %v1136, %v1765
    %1767 = vmatprep.subr.mxu0 %v1766
    %v1768 = vand.u32 %v1135, 4294901760
    %v1769 = vsub.f32 %v1135, %v1768
    %1770 = vmatpush1.msra.mxu0 %v1769
    %v1771 = vand.u32 %v1138, 4294901760
    %v1772 = vsub.f32 %v1138, %v1771
    %1773 = vmatprep.subr.mxu0 %v1772
    %v1774 = vand.u32 %v1137, 4294901760
    %v1775 = vsub.f32 %v1137, %v1774
    %1776 = vmatpush1.msra.mxu0 %v1775
    %v1777 = vand.u32 %v1140, 4294901760
    %v1778 = vsub.f32 %v1140, %v1777
    %1779 = vmatprep.subr.mxu0 %v1778
    %v1780 = vand.u32 %v1139, 4294901760
    %v1781 = vsub.f32 %v1139, %v1780
    %1782 = vmatpush1.msra.mxu0 %v1781
    %v1783 = vand.u32 %v1142, 4294901760
    %v1784 = vsub.f32 %v1142, %v1783
    %1785 = vmatprep.subr.mxu0 %v1784
    %v1786 = vand.u32 %v1141, 4294901760
    %v1787 = vsub.f32 %v1141, %v1786
    %1788 = vmatpush1.msra.mxu0 %v1787
    %v1789 = vand.u32 %v1144, 4294901760
    %v1790 = vsub.f32 %v1144, %v1789
    %1791 = vmatprep.subr.mxu0 %v1790
    %v1792 = vand.u32 %v1143, 4294901760
    %v1793 = vsub.f32 %v1143, %v1792
    %1794 = vmatpush1.msra.mxu0 %v1793
    %v1795 = vand.u32 %v1146, 4294901760
    %v1796 = vsub.f32 %v1146, %v1795
    %1797 = vmatprep.subr.mxu0 %v1796
    %v1798 = vand.u32 %v1145, 4294901760
    %v1799 = vsub.f32 %v1145, %v1798
    %1800 = vmatpush1.msra.mxu0 %v1799
    %v1801 = vand.u32 %v1148, 4294901760
    %v1802 = vsub.f32 %v1148, %v1801
    %1803 = vmatprep.subr.mxu0 %v1802
    %v1804 = vand.u32 %v1147, 4294901760
    %v1805 = vsub.f32 %v1147, %v1804
    %1806 = vmatpush1.msra.mxu0 %v1805
    %v1807 = vand.u32 %v1150, 4294901760
    %v1808 = vsub.f32 %v1150, %v1807
    %1809 = vmatprep.subr.mxu0 %v1808
    %v1810 = vand.u32 %v1149, 4294901760
    %v1811 = vsub.f32 %v1149, %v1810
    %1812 = vmatpush1.msra.mxu0 %v1811
    %v1813 = vand.u32 %v1152, 4294901760
    %v1814 = vsub.f32 %v1152, %v1813
    %1815 = vmatprep.subr.mxu0 %v1814
    %v1816 = vand.u32 %v1151, 4294901760
    %v1817 = vsub.f32 %v1151, %v1816
    %1818 = vmatpush1.msra.mxu0 %v1817
    %v1819 = vand.u32 %v1154, 4294901760
    %v1820 = vsub.f32 %v1154, %v1819
    %1821 = vmatprep.subr.mxu0 %v1820
    %v1822 = vand.u32 %v1153, 4294901760
    %v1823 = vsub.f32 %v1153, %v1822
    %1824 = vmatpush1.msra.mxu0 %v1823
    %v1825 = vand.u32 %v1156, 4294901760
    %v1826 = vsub.f32 %v1156, %v1825
    %1827 = vmatprep.subr.mxu0 %v1826
    %v1828 = vand.u32 %v1155, 4294901760
    %v1829 = vsub.f32 %v1155, %v1828
    %1830 = vmatpush1.msra.mxu0 %v1829
    %v1831 = vand.u32 %v1158, 4294901760
    %v1832 = vsub.f32 %v1158, %v1831
    %1833 = vmatprep.subr.mxu0 %v1832
    %v1834 = vand.u32 %v1157, 4294901760
    %v1835 = vsub.f32 %v1157, %v1834
    %1836 = vmatpush1.msra.mxu0 %v1835
    %v1837 = vand.u32 %v1160, 4294901760
    %v1838 = vsub.f32 %v1160, %v1837
    %1839 = vmatprep.subr.mxu0 %v1838
    %v1840 = vand.u32 %v1159, 4294901760
    %v1841 = vsub.f32 %v1159, %v1840
    %1842 = vmatpush1.msra.mxu0 %v1841
    %v1843 = vand.u32 %v1162, 4294901760
    %v1844 = vsub.f32 %v1162, %v1843
    %1845 = vmatprep.subr.mxu0 %v1844
    %v1846 = vand.u32 %v1161, 4294901760
    %v1847 = vsub.f32 %v1161, %v1846
    %1848 = vmatpush1.msra.mxu0 %v1847
    %v1849 = vand.u32 %v1164, 4294901760
    %v1850 = vsub.f32 %v1164, %v1849
    %1851 = vmatprep.subr.mxu0 %v1850
    %v1852 = vand.u32 %v1163, 4294901760
    %v1853 = vsub.f32 %v1163, %v1852
    %1854 = vmatpush1.msra.mxu0 %v1853
    %v1855 = vand.u32 %v1166, 4294901760
    %v1856 = vsub.f32 %v1166, %v1855
    %1857 = vmatprep.subr.mxu0 %v1856
    %v1858 = vand.u32 %v1165, 4294901760
    %v1859 = vsub.f32 %v1165, %v1858
    %1860 = vmatpush1.msra.mxu0 %v1859
    %v1861 = vand.u32 %v1168, 4294901760
    %v1862 = vsub.f32 %v1168, %v1861
    %1863 = vmatprep.subr.mxu0 %v1862
    %v1864 = vand.u32 %v1167, 4294901760
    %v1865 = vsub.f32 %v1167, %v1864
    %1866 = vmatpush1.msra.mxu0 %v1865
    %v1867 = vand.u32 %v1170, 4294901760
    %v1868 = vsub.f32 %v1170, %v1867
    %1869 = vmatprep.subr.mxu0 %v1868
    %v1870 = vand.u32 %v1169, 4294901760
    %v1871 = vsub.f32 %v1169, %v1870
    %1872 = vmatpush1.msra.mxu0 %v1871
    %v1873 = vand.u32 %v1172, 4294901760
    %v1874 = vsub.f32 %v1172, %v1873
    %1875 = vmatprep.subr.mxu0 %v1874
    %v1876 = vand.u32 %v1171, 4294901760
    %v1877 = vsub.f32 %v1171, %v1876
    %1878 = vmatpush1.msra.mxu0 %v1877
    %v1879 = vand.u32 %v1174, 4294901760
    %v1880 = vsub.f32 %v1174, %v1879
    %1881 = vmatprep.subr.mxu0 %v1880
    %v1882 = vand.u32 %v1173, 4294901760
    %v1883 = vsub.f32 %v1173, %v1882
    %1884 = vmatpush1.msra.mxu0 %v1883
    %v1885 = vand.u32 %v1176, 4294901760
    %v1886 = vsub.f32 %v1176, %v1885
    %1887 = vmatprep.subr.mxu0 %v1886
    %v1888 = vand.u32 %v1175, 4294901760
    %v1889 = vsub.f32 %v1175, %v1888
    %1890 = vmatpush1.msra.mxu0 %v1889
    %v1891 = vand.u32 %v1178, 4294901760
    %v1892 = vsub.f32 %v1178, %v1891
    %1893 = vmatprep.subr.mxu0 %v1892
    %v1894 = vand.u32 %v1177, 4294901760
    %v1895 = vsub.f32 %v1177, %v1894
    %1896 = vmatpush1.msra.mxu0 %v1895
    %v1897 = vand.u32 %v1180, 4294901760
    %v1898 = vsub.f32 %v1180, %v1897
    %1899 = vmatprep.subr.mxu0 %v1898
    %v1900 = vand.u32 %v1179, 4294901760
    %v1901 = vsub.f32 %v1179, %v1900
    %1902 = vmatpush1.msra.mxu0 %v1901
    %v1903 = vand.u32 %v1182, 4294901760
    %v1904 = vsub.f32 %v1182, %v1903
    %1905 = vmatprep.subr.mxu0 %v1904
    %v1906 = vand.u32 %v1181, 4294901760
    %v1907 = vsub.f32 %v1181, %v1906
    %1908 = vmatpush1.msra.mxu0 %v1907
    %v1909 = vand.u32 %v1184, 4294901760
    %v1910 = vsub.f32 %v1184, %v1909
    %1911 = vmatprep.subr.mxu0 %v1910
    %v1912 = vand.u32 %v1183, 4294901760
    %v1913 = vsub.f32 %v1183, %v1912
    %1914 = vmatpush1.msra.mxu0 %v1913
    %v1915 = vand.u32 %v1120, 4294901760
    %v1916 = vsub.f32 %v1120, %v1915
    %1917 = vmatprep.mubr.f32.mxu0 %v1916
    %v1918 = vand.u32 %v1119, 4294901760
    %v1919 = vsub.f32 %v1119, %v1918
    %1920 = vmatmul.mubr.f32.gmra.mrb[0].mxu0 %v1919
    %v1921 = vpop.f32.mrb[0].mxu0
    %v1922 = vadd.f32 %v1719, %v1921
    %v1923 = vpop.f32.mrb[0].mxu0
    %v1924 = vadd.f32 %v1721, %v1923
    %1925 = vdwg.mxu0
    %v1926 = vand.u32 %v1122, 4294901760
    %1927 = vmatprep.subr.mxu0 %v1926
    %v1928 = vand.u32 %v1121, 4294901760
    %1929 = vmatpush1.msra.mxu0 %v1928
    %v1930 = vand.u32 %v1124, 4294901760
    %1931 = vmatprep.subr.mxu0 %v1930
    %v1932 = vand.u32 %v1123, 4294901760
    %1933 = vmatpush1.msra.mxu0 %v1932
    %v1934 = vand.u32 %v1126, 4294901760
    %1935 = vmatprep.subr.mxu0 %v1934
    %v1936 = vand.u32 %v1125, 4294901760
    %1937 = vmatpush1.msra.mxu0 %v1936
    %v1938 = vand.u32 %v1128, 4294901760
    %1939 = vmatprep.subr.mxu0 %v1938
    %v1940 = vand.u32 %v1127, 4294901760
    %1941 = vmatpush1.msra.mxu0 %v1940
    %v1942 = vand.u32 %v1130, 4294901760
    %1943 = vmatprep.subr.mxu0 %v1942
    %v1944 = vand.u32 %v1129, 4294901760
    %1945 = vmatpush1.msra.mxu0 %v1944
    %v1946 = vand.u32 %v1132, 4294901760
    %1947 = vmatprep.subr.mxu0 %v1946
    %v1948 = vand.u32 %v1131, 4294901760
    %1949 = vmatpush1.msra.mxu0 %v1948
    %v1950 = vand.u32 %v1134, 4294901760
    %1951 = vmatprep.subr.mxu0 %v1950
    %v1952 = vand.u32 %v1133, 4294901760
    %1953 = vmatpush1.msra.mxu0 %v1952
    %v1954 = vand.u32 %v1136, 4294901760
    %1955 = vmatprep.subr.mxu0 %v1954
    %v1956 = vand.u32 %v1135, 4294901760
    %1957 = vmatpush1.msra.mxu0 %v1956
    %v1958 = vand.u32 %v1138, 4294901760
    %1959 = vmatprep.subr.mxu0 %v1958
    %v1960 = vand.u32 %v1137, 4294901760
    %1961 = vmatpush1.msra.mxu0 %v1960
    %v1962 = vand.u32 %v1140, 4294901760
    %1963 = vmatprep.subr.mxu0 %v1962
    %v1964 = vand.u32 %v1139, 4294901760
    %1965 = vmatpush1.msra.mxu0 %v1964
    %v1966 = vand.u32 %v1142, 4294901760
    %1967 = vmatprep.subr.mxu0 %v1966
    %v1968 = vand.u32 %v1141, 4294901760
    %1969 = vmatpush1.msra.mxu0 %v1968
    %v1970 = vand.u32 %v1144, 4294901760
    %1971 = vmatprep.subr.mxu0 %v1970
    %v1972 = vand.u32 %v1143, 4294901760
    %1973 = vmatpush1.msra.mxu0 %v1972
    %v1974 = vand.u32 %v1146, 4294901760
    %1975 = vmatprep.subr.mxu0 %v1974
    %v1976 = vand.u32 %v1145, 4294901760
    %1977 = vmatpush1.msra.mxu0 %v1976
    %v1978 = vand.u32 %v1148, 4294901760
    %1979 = vmatprep.subr.mxu0 %v1978
    %v1980 = vand.u32 %v1147, 4294901760
    %1981 = vmatpush1.msra.mxu0 %v1980
    %v1982 = vand.u32 %v1150, 4294901760
    %1983 = vmatprep.subr.mxu0 %v1982
    %v1984 = vand.u32 %v1149, 4294901760
    %1985 = vmatpush1.msra.mxu0 %v1984
    %v1986 = vand.u32 %v1152, 4294901760
    %1987 = vmatprep.subr.mxu0 %v1986
    %v1988 = vand.u32 %v1151, 4294901760
    %1989 = vmatpush1.msra.mxu0 %v1988
    %v1990 = vand.u32 %v1154, 4294901760
    %1991 = vmatprep.subr.mxu0 %v1990
    %v1992 = vand.u32 %v1153, 4294901760
    %1993 = vmatpush1.msra.mxu0 %v1992
    %v1994 = vand.u32 %v1156, 4294901760
    %1995 = vmatprep.subr.mxu0 %v1994
    %v1996 = vand.u32 %v1155, 4294901760
    %1997 = vmatpush1.msra.mxu0 %v1996
    %v1998 = vand.u32 %v1158, 4294901760
    %1999 = vmatprep.subr.mxu0 %v1998
    %v2000 = vand.u32 %v1157, 4294901760
    %2001 = vmatpush1.msra.mxu0 %v2000
    %v2002 = vand.u32 %v1160, 4294901760
    %2003 = vmatprep.subr.mxu0 %v2002
    %v2004 = vand.u32 %v1159, 4294901760
    %2005 = vmatpush1.msra.mxu0 %v2004
    %v2006 = vand.u32 %v1162, 4294901760
    %2007 = vmatprep.subr.mxu0 %v2006
    %v2008 = vand.u32 %v1161, 4294901760
    %2009 = vmatpush1.msra.mxu0 %v2008
    %v2010 = vand.u32 %v1164, 4294901760
    %2011 = vmatprep.subr.mxu0 %v2010
    %v2012 = vand.u32 %v1163, 4294901760
    %2013 = vmatpush1.msra.mxu0 %v2012
    %v2014 = vand.u32 %v1166, 4294901760
    %2015 = vmatprep.subr.mxu0 %v2014
    %v2016 = vand.u32 %v1165, 4294901760
    %2017 = vmatpush1.msra.mxu0 %v2016
    %v2018 = vand.u32 %v1168, 4294901760
    %2019 = vmatprep.subr.mxu0 %v2018
    %v2020 = vand.u32 %v1167, 4294901760
    %2021 = vmatpush1.msra.mxu0 %v2020
    %v2022 = vand.u32 %v1170, 4294901760
    %2023 = vmatprep.subr.mxu0 %v2022
    %v2024 = vand.u32 %v1169, 4294901760
    %2025 = vmatpush1.msra.mxu0 %v2024
    %v2026 = vand.u32 %v1172, 4294901760
    %2027 = vmatprep.subr.mxu0 %v2026
    %v2028 = vand.u32 %v1171, 4294901760
    %2029 = vmatpush1.msra.mxu0 %v2028
    %v2030 = vand.u32 %v1174, 4294901760
    %2031 = vmatprep.subr.mxu0 %v2030
    %v2032 = vand.u32 %v1173, 4294901760
    %2033 = vmatpush1.msra.mxu0 %v2032
    %v2034 = vand.u32 %v1176, 4294901760
    %2035 = vmatprep.subr.mxu0 %v2034
    %v2036 = vand.u32 %v1175, 4294901760
    %2037 = vmatpush1.msra.mxu0 %v2036
    %v2038 = vand.u32 %v1178, 4294901760
    %2039 = vmatprep.subr.mxu0 %v2038
    %v2040 = vand.u32 %v1177, 4294901760
    %2041 = vmatpush1.msra.mxu0 %v2040
    %v2042 = vand.u32 %v1180, 4294901760
    %2043 = vmatprep.subr.mxu0 %v2042
    %v2044 = vand.u32 %v1179, 4294901760
    %2045 = vmatpush1.msra.mxu0 %v2044
    %v2046 = vand.u32 %v1182, 4294901760
    %2047 = vmatprep.subr.mxu0 %v2046
    %v2048 = vand.u32 %v1181, 4294901760
    %2049 = vmatpush1.msra.mxu0 %v2048
    %v2050 = vand.u32 %v1184, 4294901760
    %2051 = vmatprep.subr.mxu0 %v2050
    %v2052 = vand.u32 %v1183, 4294901760
    %2053 = vmatpush1.msra.mxu0 %v2052
    %v2054 = vand.u32 %v1120, 4294901760
    %v2055 = vsub.f32 %v1120, %v2054
    %v2056 = vand.u32 %v2055, 4294901760
    %2057 = vmatprep.mubr.f32.mxu0 %v2056
    %v2058 = vand.u32 %v1119, 4294901760
    %v2059 = vsub.f32 %v1119, %v2058
    %v2060 = vand.u32 %v2059, 4294901760
    %2061 = vmatmul.mubr.f32.gmra.mrb[0].mxu0 %v2060
    %v2062 = vpop.f32.mrb[0].mxu0
    %v2063 = vadd.f32 %v1922, %v2062
    %v2064 = vpop.f32.mrb[0].mxu0
    %v2065 = vadd.f32 %v1924, %v2064
    %2066 = vdwg.mxu0
    %v2067 = vand.u32 %v1122, 4294901760
    %v2068 = vsub.f32 %v1122, %v2067
    %v2069 = vand.u32 %v2068, 4294901760
    %2070 = vmatprep.subr.mxu0 %v2069
    %v2071 = vand.u32 %v1121, 4294901760
    %v2072 = vsub.f32 %v1121, %v2071
    %v2073 = vand.u32 %v2072, 4294901760
    %2074 = vmatpush1.msra.mxu0 %v2073
    %v2075 = vand.u32 %v1124, 4294901760
    %v2076 = vsub.f32 %v1124, %v2075
    %v2077 = vand.u32 %v2076, 4294901760
    %2078 = vmatprep.subr.mxu0 %v2077
    %v2079 = vand.u32 %v1123, 4294901760
    %v2080 = vsub.f32 %v1123, %v2079
    %v2081 = vand.u32 %v2080, 4294901760
    %2082 = vmatpush1.msra.mxu0 %v2081
    %v2083 = vand.u32 %v1126, 4294901760
    %v2084 = vsub.f32 %v1126, %v2083
    %v2085 = vand.u32 %v2084, 4294901760
    %2086 = vmatprep.subr.mxu0 %v2085
    %v2087 = vand.u32 %v1125, 4294901760
    %v2088 = vsub.f32 %v1125, %v2087
    %v2089 = vand.u32 %v2088, 4294901760
    %2090 = vmatpush1.msra.mxu0 %v2089
    %v2091 = vand.u32 %v1128, 4294901760
    %v2092 = vsub.f32 %v1128, %v2091
    %v2093 = vand.u32 %v2092, 4294901760
    %2094 = vmatprep.subr.mxu0 %v2093
    %v2095 = vand.u32 %v1127, 4294901760
    %v2096 = vsub.f32 %v1127, %v2095
    %v2097 = vand.u32 %v2096, 4294901760
    %2098 = vmatpush1.msra.mxu0 %v2097
    %v2099 = vand.u32 %v1130, 4294901760
    %v2100 = vsub.f32 %v1130, %v2099
    %v2101 = vand.u32 %v2100, 4294901760
    %2102 = vmatprep.subr.mxu0 %v2101
    %v2103 = vand.u32 %v1129, 4294901760
    %v2104 = vsub.f32 %v1129, %v2103
    %v2105 = vand.u32 %v2104, 4294901760
    %2106 = vmatpush1.msra.mxu0 %v2105
    %v2107 = vand.u32 %v1132, 4294901760
    %v2108 = vsub.f32 %v1132, %v2107
    %v2109 = vand.u32 %v2108, 4294901760
    %2110 = vmatprep.subr.mxu0 %v2109
    %v2111 = vand.u32 %v1131, 4294901760
    %v2112 = vsub.f32 %v1131, %v2111
    %v2113 = vand.u32 %v2112, 4294901760
    %2114 = vmatpush1.msra.mxu0 %v2113
    %v2115 = vand.u32 %v1134, 4294901760
    %v2116 = vsub.f32 %v1134, %v2115
    %v2117 = vand.u32 %v2116, 4294901760
    %2118 = vmatprep.subr.mxu0 %v2117
    %v2119 = vand.u32 %v1133, 4294901760
    %v2120 = vsub.f32 %v1133, %v2119
    %v2121 = vand.u32 %v2120, 4294901760
    %2122 = vmatpush1.msra.mxu0 %v2121
    %v2123 = vand.u32 %v1136, 4294901760
    %v2124 = vsub.f32 %v1136, %v2123
    %v2125 = vand.u32 %v2124, 4294901760
    %2126 = vmatprep.subr.mxu0 %v2125
    %v2127 = vand.u32 %v1135, 4294901760
    %v2128 = vsub.f32 %v1135, %v2127
    %v2129 = vand.u32 %v2128, 4294901760
    %2130 = vmatpush1.msra.mxu0 %v2129
    %v2131 = vand.u32 %v1138, 4294901760
    %v2132 = vsub.f32 %v1138, %v2131
    %v2133 = vand.u32 %v2132, 4294901760
    %2134 = vmatprep.subr.mxu0 %v2133
    %v2135 = vand.u32 %v1137, 4294901760
    %v2136 = vsub.f32 %v1137, %v2135
    %v2137 = vand.u32 %v2136, 4294901760
    %2138 = vmatpush1.msra.mxu0 %v2137
    %v2139 = vand.u32 %v1140, 4294901760
    %v2140 = vsub.f32 %v1140, %v2139
    %v2141 = vand.u32 %v2140, 4294901760
    %2142 = vmatprep.subr.mxu0 %v2141
    %v2143 = vand.u32 %v1139, 4294901760
    %v2144 = vsub.f32 %v1139, %v2143
    %v2145 = vand.u32 %v2144, 4294901760
    %2146 = vmatpush1.msra.mxu0 %v2145
    %v2147 = vand.u32 %v1142, 4294901760
    %v2148 = vsub.f32 %v1142, %v2147
    %v2149 = vand.u32 %v2148, 4294901760
    %2150 = vmatprep.subr.mxu0 %v2149
    %v2151 = vand.u32 %v1141, 4294901760
    %v2152 = vsub.f32 %v1141, %v2151
    %v2153 = vand.u32 %v2152, 4294901760
    %2154 = vmatpush1.msra.mxu0 %v2153
    %v2155 = vand.u32 %v1144, 4294901760
    %v2156 = vsub.f32 %v1144, %v2155
    %v2157 = vand.u32 %v2156, 4294901760
    %2158 = vmatprep.subr.mxu0 %v2157
    %v2159 = vand.u32 %v1143, 4294901760
    %v2160 = vsub.f32 %v1143, %v2159
    %v2161 = vand.u32 %v2160, 4294901760
    %2162 = vmatpush1.msra.mxu0 %v2161
    %v2163 = vand.u32 %v1146, 4294901760
    %v2164 = vsub.f32 %v1146, %v2163
    %v2165 = vand.u32 %v2164, 4294901760
    %2166 = vmatprep.subr.mxu0 %v2165
    %v2167 = vand.u32 %v1145, 4294901760
    %v2168 = vsub.f32 %v1145, %v2167
    %v2169 = vand.u32 %v2168, 4294901760
    %2170 = vmatpush1.msra.mxu0 %v2169
    %v2171 = vand.u32 %v1148, 4294901760
    %v2172 = vsub.f32 %v1148, %v2171
    %v2173 = vand.u32 %v2172, 4294901760
    %2174 = vmatprep.subr.mxu0 %v2173
    %v2175 = vand.u32 %v1147, 4294901760
    %v2176 = vsub.f32 %v1147, %v2175
    %v2177 = vand.u32 %v2176, 4294901760
    %2178 = vmatpush1.msra.mxu0 %v2177
    %v2179 = vand.u32 %v1150, 4294901760
    %v2180 = vsub.f32 %v1150, %v2179
    %v2181 = vand.u32 %v2180, 4294901760
    %2182 = vmatprep.subr.mxu0 %v2181
    %v2183 = vand.u32 %v1149, 4294901760
    %v2184 = vsub.f32 %v1149, %v2183
    %v2185 = vand.u32 %v2184, 4294901760
    %2186 = vmatpush1.msra.mxu0 %v2185
    %v2187 = vand.u32 %v1152, 4294901760
    %v2188 = vsub.f32 %v1152, %v2187
    %v2189 = vand.u32 %v2188, 4294901760
    %2190 = vmatprep.subr.mxu0 %v2189
    %v2191 = vand.u32 %v1151, 4294901760
    %v2192 = vsub.f32 %v1151, %v2191
    %v2193 = vand.u32 %v2192, 4294901760
    %2194 = vmatpush1.msra.mxu0 %v2193
    %v2195 = vand.u32 %v1154, 4294901760
    %v2196 = vsub.f32 %v1154, %v2195
    %v2197 = vand.u32 %v2196, 4294901760
    %2198 = vmatprep.subr.mxu0 %v2197
    %v2199 = vand.u32 %v1153, 4294901760
    %v2200 = vsub.f32 %v1153, %v2199
    %v2201 = vand.u32 %v2200, 4294901760
    %2202 = vmatpush1.msra.mxu0 %v2201
    %v2203 = vand.u32 %v1156, 4294901760
    %v2204 = vsub.f32 %v1156, %v2203
    %v2205 = vand.u32 %v2204, 4294901760
    %2206 = vmatprep.subr.mxu0 %v2205
    %v2207 = vand.u32 %v1155, 4294901760
    %v2208 = vsub.f32 %v1155, %v2207
    %v2209 = vand.u32 %v2208, 4294901760
    %2210 = vmatpush1.msra.mxu0 %v2209
    %v2211 = vand.u32 %v1158, 4294901760
    %v2212 = vsub.f32 %v1158, %v2211
    %v2213 = vand.u32 %v2212, 4294901760
    %2214 = vmatprep.subr.mxu0 %v2213
    %v2215 = vand.u32 %v1157, 4294901760
    %v2216 = vsub.f32 %v1157, %v2215
    %v2217 = vand.u32 %v2216, 4294901760
    %2218 = vmatpush1.msra.mxu0 %v2217
    %v2219 = vand.u32 %v1160, 4294901760
    %v2220 = vsub.f32 %v1160, %v2219
    %v2221 = vand.u32 %v2220, 4294901760
    %2222 = vmatprep.subr.mxu0 %v2221
    %v2223 = vand.u32 %v1159, 4294901760
    %v2224 = vsub.f32 %v1159, %v2223
    %v2225 = vand.u32 %v2224, 4294901760
    %2226 = vmatpush1.msra.mxu0 %v2225
    %v2227 = vand.u32 %v1162, 4294901760
    %v2228 = vsub.f32 %v1162, %v2227
    %v2229 = vand.u32 %v2228, 4294901760
    %2230 = vmatprep.subr.mxu0 %v2229
    %v2231 = vand.u32 %v1161, 4294901760
    %v2232 = vsub.f32 %v1161, %v2231
    %v2233 = vand.u32 %v2232, 4294901760
    %2234 = vmatpush1.msra.mxu0 %v2233
    %v2235 = vand.u32 %v1164, 4294901760
    %v2236 = vsub.f32 %v1164, %v2235
    %v2237 = vand.u32 %v2236, 4294901760
    %2238 = vmatprep.subr.mxu0 %v2237
    %v2239 = vand.u32 %v1163, 4294901760
    %v2240 = vsub.f32 %v1163, %v2239
    %v2241 = vand.u32 %v2240, 4294901760
    %2242 = vmatpush1.msra.mxu0 %v2241
    %v2243 = vand.u32 %v1166, 4294901760
    %v2244 = vsub.f32 %v1166, %v2243
    %v2245 = vand.u32 %v2244, 4294901760
    %2246 = vmatprep.subr.mxu0 %v2245
    %v2247 = vand.u32 %v1165, 4294901760
    %v2248 = vsub.f32 %v1165, %v2247
    %v2249 = vand.u32 %v2248, 4294901760
    %2250 = vmatpush1.msra.mxu0 %v2249
    %v2251 = vand.u32 %v1168, 4294901760
    %v2252 = vsub.f32 %v1168, %v2251
    %v2253 = vand.u32 %v2252, 4294901760
    %2254 = vmatprep.subr.mxu0 %v2253
    %v2255 = vand.u32 %v1167, 4294901760
    %v2256 = vsub.f32 %v1167, %v2255
    %v2257 = vand.u32 %v2256, 4294901760
    %2258 = vmatpush1.msra.mxu0 %v2257
    %v2259 = vand.u32 %v1170, 4294901760
    %v2260 = vsub.f32 %v1170, %v2259
    %v2261 = vand.u32 %v2260, 4294901760
    %2262 = vmatprep.subr.mxu0 %v2261
    %v2263 = vand.u32 %v1169, 4294901760
    %v2264 = vsub.f32 %v1169, %v2263
    %v2265 = vand.u32 %v2264, 4294901760
    %2266 = vmatpush1.msra.mxu0 %v2265
    %v2267 = vand.u32 %v1172, 4294901760
    %v2268 = vsub.f32 %v1172, %v2267
    %v2269 = vand.u32 %v2268, 4294901760
    %2270 = vmatprep.subr.mxu0 %v2269
    %v2271 = vand.u32 %v1171, 4294901760
    %v2272 = vsub.f32 %v1171, %v2271
    %v2273 = vand.u32 %v2272, 4294901760
    %2274 = vmatpush1.msra.mxu0 %v2273
    %v2275 = vand.u32 %v1174, 4294901760
    %v2276 = vsub.f32 %v1174, %v2275
    %v2277 = vand.u32 %v2276, 4294901760
    %2278 = vmatprep.subr.mxu0 %v2277
    %v2279 = vand.u32 %v1173, 4294901760
    %v2280 = vsub.f32 %v1173, %v2279
    %v2281 = vand.u32 %v2280, 4294901760
    %2282 = vmatpush1.msra.mxu0 %v2281
    %v2283 = vand.u32 %v1176, 4294901760
    %v2284 = vsub.f32 %v1176, %v2283
    %v2285 = vand.u32 %v2284, 4294901760
    %2286 = vmatprep.subr.mxu0 %v2285
    %v2287 = vand.u32 %v1175, 4294901760
    %v2288 = vsub.f32 %v1175, %v2287
    %v2289 = vand.u32 %v2288, 4294901760
    %2290 = vmatpush1.msra.mxu0 %v2289
    %v2291 = vand.u32 %v1178, 4294901760
    %v2292 = vsub.f32 %v1178, %v2291
    %v2293 = vand.u32 %v2292, 4294901760
    %2294 = vmatprep.subr.mxu0 %v2293
    %v2295 = vand.u32 %v1177, 4294901760
    %v2296 = vsub.f32 %v1177, %v2295
    %v2297 = vand.u32 %v2296, 4294901760
    %2298 = vmatpush1.msra.mxu0 %v2297
    %v2299 = vand.u32 %v1180, 4294901760
    %v2300 = vsub.f32 %v1180, %v2299
    %v2301 = vand.u32 %v2300, 4294901760
    %2302 = vmatprep.subr.mxu0 %v2301
    %v2303 = vand.u32 %v1179, 4294901760
    %v2304 = vsub.f32 %v1179, %v2303
    %v2305 = vand.u32 %v2304, 4294901760
    %2306 = vmatpush1.msra.mxu0 %v2305
    %v2307 = vand.u32 %v1182, 4294901760
    %v2308 = vsub.f32 %v1182, %v2307
    %v2309 = vand.u32 %v2308, 4294901760
    %2310 = vmatprep.subr.mxu0 %v2309
    %v2311 = vand.u32 %v1181, 4294901760
    %v2312 = vsub.f32 %v1181, %v2311
    %v2313 = vand.u32 %v2312, 4294901760
    %2314 = vmatpush1.msra.mxu0 %v2313
    %v2315 = vand.u32 %v1184, 4294901760
    %v2316 = vsub.f32 %v1184, %v2315
    %v2317 = vand.u32 %v2316, 4294901760
    %2318 = vmatprep.subr.mxu0 %v2317
    %v2319 = vand.u32 %v1183, 4294901760
    %v2320 = vsub.f32 %v1183, %v2319
    %v2321 = vand.u32 %v2320, 4294901760
    %2322 = vmatpush1.msra.mxu0 %v2321
    %v2323 = vand.u32 %v1120, 4294901760
    %2324 = vmatprep.mubr.f32.mxu0 %v2323
    %v2325 = vand.u32 %v1119, 4294901760
    %2326 = vmatmul.mubr.f32.gmra.mrb[0].mxu0 %v2325
    %v2327 = vpop.f32.mrb[0].mxu0
    %v2328 = vadd.f32 %v2063, %v2327
    %v2329 = vpop.f32.mrb[0].mxu0
    %v2330 = vadd.f32 %v2065, %v2329
    %2331 = vdwg.mxu0
    %v2332 = vand.u32 %v1122, 4294901760
    %2333 = vmatprep.subr.mxu0 %v2332
    %v2334 = vand.u32 %v1121, 4294901760
    %2335 = vmatpush1.msra.mxu0 %v2334
    %v2336 = vand.u32 %v1124, 4294901760
    %2337 = vmatprep.subr.mxu0 %v2336
    %v2338 = vand.u32 %v1123, 4294901760
    %2339 = vmatpush1.msra.mxu0 %v2338
    %v2340 = vand.u32 %v1126, 4294901760
    %2341 = vmatprep.subr.mxu0 %v2340
    %v2342 = vand.u32 %v1125, 4294901760
    %2343 = vmatpush1.msra.mxu0 %v2342
    %v2344 = vand.u32 %v1128, 4294901760
    %2345 = vmatprep.subr.mxu0 %v2344
    %v2346 = vand.u32 %v1127, 4294901760
    %2347 = vmatpush1.msra.mxu0 %v2346
    %v2348 = vand.u32 %v1130, 4294901760
    %2349 = vmatprep.subr.mxu0 %v2348
    %v2350 = vand.u32 %v1129, 4294901760
    %2351 = vmatpush1.msra.mxu0 %v2350
    %v2352 = vand.u32 %v1132, 4294901760
    %2353 = vmatprep.subr.mxu0 %v2352
    %v2354 = vand.u32 %v1131, 4294901760
    %2355 = vmatpush1.msra.mxu0 %v2354
    %v2356 = vand.u32 %v1134, 4294901760
    %2357 = vmatprep.subr.mxu0 %v2356
    %v2358 = vand.u32 %v1133, 4294901760
    %2359 = vmatpush1.msra.mxu0 %v2358
    %v2360 = vand.u32 %v1136, 4294901760
    %2361 = vmatprep.subr.mxu0 %v2360
    %v2362 = vand.u32 %v1135, 4294901760
    %2363 = vmatpush1.msra.mxu0 %v2362
    %v2364 = vand.u32 %v1138, 4294901760
    %2365 = vmatprep.subr.mxu0 %v2364
    %v2366 = vand.u32 %v1137, 4294901760
    %2367 = vmatpush1.msra.mxu0 %v2366
    %v2368 = vand.u32 %v1140, 4294901760
    %2369 = vmatprep.subr.mxu0 %v2368
    %v2370 = vand.u32 %v1139, 4294901760
    %2371 = vmatpush1.msra.mxu0 %v2370
    %v2372 = vand.u32 %v1142, 4294901760
    %2373 = vmatprep.subr.mxu0 %v2372
    %v2374 = vand.u32 %v1141, 4294901760
    %2375 = vmatpush1.msra.mxu0 %v2374
    %v2376 = vand.u32 %v1144, 4294901760
    %2377 = vmatprep.subr.mxu0 %v2376
    %v2378 = vand.u32 %v1143, 4294901760
    %2379 = vmatpush1.msra.mxu0 %v2378
    %v2380 = vand.u32 %v1146, 4294901760
    %2381 = vmatprep.subr.mxu0 %v2380
    %v2382 = vand.u32 %v1145, 4294901760
    %2383 = vmatpush1.msra.mxu0 %v2382
    %v2384 = vand.u32 %v1148, 4294901760
    %2385 = vmatprep.subr.mxu0 %v2384
    %v2386 = vand.u32 %v1147, 4294901760
    %2387 = vmatpush1.msra.mxu0 %v2386
    %v2388 = vand.u32 %v1150, 4294901760
    %2389 = vmatprep.subr.mxu0 %v2388
    %v2390 = vand.u32 %v1149, 4294901760
    %2391 = vmatpush1.msra.mxu0 %v2390
    %v2392 = vand.u32 %v1152, 4294901760
    %2393 = vmatprep.subr.mxu0 %v2392
    %v2394 = vand.u32 %v1151, 4294901760
    %2395 = vmatpush1.msra.mxu0 %v2394
    %v2396 = vand.u32 %v1154, 4294901760
    %2397 = vmatprep.subr.mxu0 %v2396
    %v2398 = vand.u32 %v1153, 4294901760
    %2399 = vmatpush1.msra.mxu0 %v2398
    %v2400 = vand.u32 %v1156, 4294901760
    %2401 = vmatprep.subr.mxu0 %v2400
    %v2402 = vand.u32 %v1155, 4294901760
    %2403 = vmatpush1.msra.mxu0 %v2402
    %v2404 = vand.u32 %v1158, 4294901760
    %2405 = vmatprep.subr.mxu0 %v2404
    %v2406 = vand.u32 %v1157, 4294901760
    %2407 = vmatpush1.msra.mxu0 %v2406
    %v2408 = vand.u32 %v1160, 4294901760
    %2409 = vmatprep.subr.mxu0 %v2408
    %v2410 = vand.u32 %v1159, 4294901760
    %2411 = vmatpush1.msra.mxu0 %v2410
    %v2412 = vand.u32 %v1162, 4294901760
    %2413 = vmatprep.subr.mxu0 %v2412
    %v2414 = vand.u32 %v1161, 4294901760
    %2415 = vmatpush1.msra.mxu0 %v2414
    %v2416 = vand.u32 %v1164, 4294901760
    %2417 = vmatprep.subr.mxu0 %v2416
    %v2418 = vand.u32 %v1163, 4294901760
    %2419 = vmatpush1.msra.mxu0 %v2418
    %v2420 = vand.u32 %v1166, 4294901760
    %2421 = vmatprep.subr.mxu0 %v2420
    %v2422 = vand.u32 %v1165, 4294901760
    %2423 = vmatpush1.msra.mxu0 %v2422
    %v2424 = vand.u32 %v1168, 4294901760
    %2425 = vmatprep.subr.mxu0 %v2424
    %v2426 = vand.u32 %v1167, 4294901760
    %2427 = vmatpush1.msra.mxu0 %v2426
    %v2428 = vand.u32 %v1170, 4294901760
    %2429 = vmatprep.subr.mxu0 %v2428
    %v2430 = vand.u32 %v1169, 4294901760
    %2431 = vmatpush1.msra.mxu0 %v2430
    %v2432 = vand.u32 %v1172, 4294901760
    %2433 = vmatprep.subr.mxu0 %v2432
    %v2434 = vand.u32 %v1171, 4294901760
    %2435 = vmatpush1.msra.mxu0 %v2434
    %v2436 = vand.u32 %v1174, 4294901760
    %2437 = vmatprep.subr.mxu0 %v2436
    %v2438 = vand.u32 %v1173, 4294901760
    %2439 = vmatpush1.msra.mxu0 %v2438
    %v2440 = vand.u32 %v1176, 4294901760
    %2441 = vmatprep.subr.mxu0 %v2440
    %v2442 = vand.u32 %v1175, 4294901760
    %2443 = vmatpush1.msra.mxu0 %v2442
    %v2444 = vand.u32 %v1178, 4294901760
    %2445 = vmatprep.subr.mxu0 %v2444
    %v2446 = vand.u32 %v1177, 4294901760
    %2447 = vmatpush1.msra.mxu0 %v2446
    %v2448 = vand.u32 %v1180, 4294901760
    %2449 = vmatprep.subr.mxu0 %v2448
    %v2450 = vand.u32 %v1179, 4294901760
    %2451 = vmatpush1.msra.mxu0 %v2450
    %v2452 = vand.u32 %v1182, 4294901760
    %2453 = vmatprep.subr.mxu0 %v2452
    %v2454 = vand.u32 %v1181, 4294901760
    %2455 = vmatpush1.msra.mxu0 %v2454
    %v2456 = vand.u32 %v1184, 4294901760
    %2457 = vmatprep.subr.mxu0 %v2456
    %v2458 = vand.u32 %v1183, 4294901760
    %2459 = vmatpush1.msra.mxu0 %v2458
    %v2460 = vand.u32 %v1120, 4294901760
    %2461 = vmatprep.mubr.f32.mxu0 %v2460
    %v2462 = vand.u32 %v1119, 4294901760
    %2463 = vmatmul.mubr.f32.gmra.mrb[0].mxu0 %v2462
    %v2464 = vpop.f32.mrb[0].mxu0
    %v2465 = vadd.f32 %v2328, %v2464
    %v2466 = vpop.f32.mrb[0].mxu0
    %v2467 = vadd.f32 %v2330, %v2466
    %2468 = vdwg.mxu0
    %v2469 = vadd.f32 %v1117, %v2465
    %v2470 = vadd.f32 %v1118, %v2467
    %2471 = vst [vmem:[#allocation11] sm:$0xff] %v2469
    %2472 = vst [vmem:[#allocation11 + $0x8] sm:$0xff] %v2470
    // Predicated region
    $region46: #{tpu_custom_call.1} parent=1 // pred_check
      _
    $region47: #{tpu_custom_call.1} parent=1 // pred_check_branch
      %2474 = sbr.rel (0) target = $region49
    $region48: #{tpu_custom_call.1} parent=1 // pred_region
      %s2476 = ssub.s32 256, 256
      %2477 = vsyncadd [#allocation4], %s2476
      %s2479 = sshll.u32 [#allocation11], 4
      %s2480 = int_to_ptr.vmem [resolvable:$true] %s2479
      %2482 = dma.vmem_to_hbm [thread:$0]  %s2480, 256, %s5, [#allocation4]
    $region49: #{tpu_custom_call.1} parent=1 // pred_fallthru
      _
    // Predicated region
    $region50: #{tpu_custom_call.1} parent=1 // pred_check
      _
    $region51: #{tpu_custom_call.1} parent=1 // pred_check_branch
      %2484 = sbr.rel (0) target = $region53
    $region52: #{tpu_custom_call.1} parent=1 // pred_region
      %2485 = dma.done [#allocation4], 256
    $region53: #{tpu_custom_call.1} parent=1 // pred_fallthru
      _
    %2486 = vsyncpa [#allocation3], 1
    %2487 = vsyncpa [#allocation6], 1
    %2488 = vsyncpa [#allocation9], 1
    %2489 = vsyncpa [#allocation4], 1

</llo_original>
